<compile_context>
chip_gen: v7x
topology: tpu7x:2x2x1
jax: 0.10.0
libtpu: 0.0.40
codegen_flags: <defaults>
</compile_context>

<pallas_src>
import functools
import math

import jax
import jax.numpy as jnp
from jax.experimental import pallas as pl
from jax.experimental.pallas import tpu as pltpu


# ----------------------------------------------------------------------------
# Config (matches the PyTorch module constructor arguments)
# ----------------------------------------------------------------------------
class MLAConfig:
    hidden_dim = 32
    query_head_dim = 16          # = qk_nrope_head_dim + qk_rope_head_dim
    value_head_dim = 16
    num_kv_heads = 2
    num_heads = 4
    max_len = 8
    q_lora_rank = 16
    kv_lora_rank = 16
    qk_rope_head_dim = 8
    qk_nrope_head_dim = 8
    keyvalue_head_dim = 16       # unused in forward()
    attention_bias = True        # bias on lora_a projections and output proj
    scaling_factor = 1.0
    is_rope_interleave = False
    mscale_dim = 0               # falsy -> mscale branch skipped (as in spec)
    dropout_rate = None
    eps = 1e-6
    base = 10000.0


# ----------------------------------------------------------------------------
# RoPE tables (wrapper-side helpers; also used by the pure-jnp reference)
# ----------------------------------------------------------------------------
def rope_sin_cos(seq_len, dim, base=10000.0):
    inv_freq = 1.0 / (base ** (jnp.arange(0, dim, 2, dtype=jnp.float32) / dim))
    t = jnp.arange(seq_len, dtype=jnp.float32)
    freqs = jnp.outer(t, inv_freq)                       # [S, dim/2]
    emb = jnp.concatenate([freqs, freqs], axis=-1)       # [S, dim]
    return jnp.sin(emb), jnp.cos(emb)


def apply_rope(x, sin, cos):
    half = x.shape[-1] // 2
    rot = jnp.concatenate([-x[..., half:], x[..., :half]], axis=-1)
    return x * cos + rot * sin


# ----------------------------------------------------------------------------
# The fused Pallas kernel: one grid step == one batch element, all heads
# ----------------------------------------------------------------------------
def _mla_fused_kernel(
    x_ref, wa_ref, ba_ref, gq_ref, gkv_ref, wqb_ref, wkvb_ref,
    cos_ref, sin_ref, wo_ref, bo_ref,
    out_ref, *maybe_attnw,
    num_heads, num_kv_heads, q_lora_rank, kv_lora_rank,
    rope_dim, nrope_dim, v_dim, query_head_dim, eps, scale,
):
    f32 = jnp.float32
    bf16 = jnp.bfloat16
    num_groups = num_heads // num_kv_heads
    half = rope_dim // 2
    kv_cols = nrope_dim + v_dim

    x = x_ref[...]                                            # [S, H] f32

    # ---- batched LoRA-A: one bf16 MXU matmul covers Q and KV paths ----
    a = jnp.dot(x.astype(bf16), wa_ref[...], preferred_element_type=f32)
    a = a + ba_ref[...]
    q_a = a[:, :q_lora_rank]                                  # [S, Rq]
    kv_a = a[:, q_lora_rank:q_lora_rank + kv_lora_rank]       # [S, Rkv]
    k_rope = a[:, q_lora_rank + kv_lora_rank:]                # [S, rope]

    # ---- fused RMSNorm (f32, VPU/EUP), results stay in registers ----
    def _rms(v, g):
        return v * jax.lax.rsqrt(jnp.mean(v * v, axis=-1, keepdims=True) + eps) * g

    q_n = _rms(q_a, gq_ref[...])
    kv_n = _rms(kv_a, gkv_ref[...])

    # ---- LoRA-B: two dense bf16 matmuls (no block-diag zero padding) ----
    q_b = jnp.dot(q_n.astype(bf16), wqb_ref[...], preferred_element_type=f32)
    kv_b = jnp.dot(kv_n.astype(bf16), wkvb_ref[...], preferred_element_type=f32)

    # ---- RoPE (no MXU): rotate-half is a lane permutation ----
    cos = cos_ref[...]                                        # [S, rope]
    sin = sin_ref[...]

    def _rotate_half(v):
        if rope_dim % 128 == 0:
            # lane-aligned rope dim: XLU rotate (free slot) + VPU sign flip
            rolled = pltpu.roll(v, shift=half, axis=1)
            sign = jnp.where(
                jax.lax.broadcasted_iota(jnp.int32, v.shape, 1) < half, -1.0, 1.0)
            return rolled * sign
        # small / unaligned rope dim: lane slice + concat (pure VPU, no MXU)
        return jnp.concatenate([-v[:, half:], v[:, :half]], axis=-1)

    def _rope(v):
        return v * cos + _rotate_half(v) * sin

    k_rope_emb = _rope(k_rope)                                # shared by all kv heads

    # ---- per-kv-head K/V slabs (GQA: no repeat, queries index g = h // G) ----
    k_list, v_list = [], []
    for g in range(num_kv_heads):
        k_nr_g = kv_b[:, g * kv_cols: g * kv_cols + nrope_dim]
        v_list.append(kv_b[:, g * kv_cols + nrope_dim: (g + 1) * kv_cols])
        k_list.append(jnp.concatenate([k_nr_g, k_rope_emb], axis=-1))  # [S, qhd]

    dn = (((1,), (1,)), ((), ()))                             # A @ B^T (no K copy)
    p_list, o_list = [], []
    for h in range(num_heads):
        g = h // num_groups
        q_nr_h = q_b[:, h * query_head_dim: h * query_head_dim + nrope_dim]
        q_ro_h = q_b[:, h * query_head_dim + nrope_dim: (h + 1) * query_head_dim]
        q_h = jnp.concatenate([q_nr_h, _rope(q_ro_h)], axis=-1)   # [S, qhd]

        # one 16-deep score matmul per head (was two 8-deep ones)
        s = jax.lax.dot_general(q_h.astype(bf16), k_list[g].astype(bf16), dn,
                                preferred_element_type=f32) * scale
        m = jnp.max(s, axis=-1, keepdims=True)
        e = jnp.exp(s - m)
        # exact division: attention weights are a declared module output
        p = e / jnp.sum(e, axis=-1, keepdims=True)
        p_list.append(p)
        o_list.append(jnp.dot(p.astype(bf16), v_list[g].astype(bf16),
                              preferred_element_type=f32))        # [S, v]

    # ---- output projection hoisted out of the head loop: one MXU matmul ----
    o_all = jnp.concatenate(o_list, axis=-1)                  # [S, NH*v]
    out_ref[...] = (jnp.dot(o_all.astype(bf16), wo_ref[...],
                            preferred_element_type=f32) + bo_ref[...])

    if maybe_attnw:
        # single lane-dense [S, NH*S] store (wrapper reshapes to [B, NH, S, S])
        maybe_attnw[0][...] = jnp.concatenate(p_list, axis=-1)


# ----------------------------------------------------------------------------
# Wrapper: weight casting / packing (layout plumbing) + one pallas_call
# ----------------------------------------------------------------------------
def mla_forward(params, hidden_states, cfg, attention_mask=None,
                return_attn_weights=True):
    c = cfg
    B, S, H = hidden_states.shape
    NH, KVH = c.num_heads, c.num_kv_heads
    nrope, rope, v_dim = c.qk_nrope_head_dim, c.qk_rope_head_dim, c.value_head_dim
    qhd = c.query_head_dim
    Rq, Rkv = c.q_lora_rank, c.kv_lora_rank

    if attention_mask is not None:
        # TODO(synk): attention_mask path not implemented (mask is None here).
        raise NotImplementedError("attention_mask is not supported by this kernel")

    bf16 = jnp.bfloat16
    # --- batched LoRA-A weights: concat along N; MXU inputs shipped in bf16 ---
    wa = jnp.concatenate([params["q_lora_a_w"], params["kv_lora_a_w"]],
                         axis=1).astype(bf16)
    ba = jnp.concatenate([params["q_lora_a_b"], params["kv_lora_a_b"]])[None, :]
    # --- LoRA-B weights in their native head-major layout (no permutation) ---
    wqb = params["q_lora_b_w"].astype(bf16)                   # [Rq, NH*qhd]
    wkvb = params["kv_lora_b_w"].astype(bf16)                 # [Rkv, KVH*(nrope+v)]
    wo = params["out_w"].astype(bf16)                         # [NH*v, H]
    bo = params["out_b"][None, :]
    gq = params["q_lora_rms_w"][None, :]
    gkv = params["kv_lora_rms_w"][None, :]

    sin, cos = rope_sin_cos(S, rope, c.base)                  # [S, rope] (no NH tile)

    # --- scale (mirrors the spec, incl. the mscale branch) ---
    scale = 1.0 / math.sqrt(float(qhd))
    if c.mscale_dim:
        mscale = 1.0 if scale <= 1.0 else 0.1 * c.mscale_dim * math.log(c.scaling_factor) + 1.0
        scale = scale * mscale * mscale

    A_cols = Rq + Rkv + rope

    kernel = functools.partial(
        _mla_fused_kernel,
        num_heads=NH, num_kv_heads=KVH,
        q_lora_rank=Rq, kv_lora_rank=Rkv,
        rope_dim=rope, nrope_dim=nrope, v_dim=v_dim,
        query_head_dim=qhd, eps=c.eps, scale=scale,
    )

    # --- cost estimate (helps XLA schedule the fused custom call) ---
    flops_per_b = (
        2 * S * H * A_cols
        + 2 * S * Rq * (NH * qhd)
        + 2 * S * Rkv * (KVH * (nrope + v_dim))
        + NH * 2 * S * S * qhd
        + NH * 2 * S * S * v_dim
        + 2 * S * (NH * v_dim) * H
    )
    inputs = (hidden_states, wa, ba, gq, gkv, wqb, wkvb, cos, sin, wo, bo)
    out_bytes = B * S * H * 4 + (B * NH * S * S * 4 if return_attn_weights else 0)
    cost = pl.CostEstimate(
        flops=B * flops_per_b,
        transcendentals=B * NH * S * S,
        bytes_accessed=sum(int(a.size) * a.dtype.itemsize for a in inputs) + out_bytes,
    )

    # weights/tables: un-gridded whole-array VMEM residency (no double buffers)
    vmem_spec = pl.BlockSpec(memory_space=pltpu.MemorySpace.VMEM)
    in_specs = [pl.BlockSpec((None, S, H), lambda b: (b, 0, 0))] + [vmem_spec] * 10

    out_shape = [jax.ShapeDtypeStruct((B, S, H), jnp.float32)]
    out_specs = [pl.BlockSpec((None, S, H), lambda b: (b, 0, 0))]
    if return_attn_weights:
        out_shape.append(jax.ShapeDtypeStruct((B, S, NH * S), jnp.float32))
        out_specs.append(pl.BlockSpec((None, S, NH * S), lambda b: (b, 0, 0)))

    results = pl.pallas_call(
        kernel,
        out_shape=tuple(out_shape),
        grid=(B,),
        in_specs=in_specs,
        out_specs=tuple(out_specs),
        compiler_params=pltpu.CompilerParams(
            dimension_semantics=("parallel",),
            vmem_limit_bytes=64 * 1024 * 1024,
        ),
        cost_estimate=cost,
    )(*inputs)

    if return_attn_weights:
        out, attnw_flat = results
        attn_w = attnw_flat.reshape(B, S, NH, S).transpose(0, 2, 1, 3)
        return out, attn_w
    return results[0], None


# ----------------------------------------------------------------------------
# Parameter init (nn.Linear weights stored transposed: [in, out])
# ----------------------------------------------------------------------------
def init_params(key, cfg):
    c = cfg
    keys = jax.random.split(key, 8)

    def w(k, shape):
        return jax.random.normal(k, shape, dtype=jnp.float32) * 0.05

    return {
        "q_lora_a_w": w(keys[0], (c.hidden_dim, c.q_lora_rank)),
        "q_lora_a_b": w(keys[1], (c.q_lora_rank,)),
        "q_lora_rms_w": jnp.ones((c.q_lora_rank,), jnp.float32),
        "q_lora_b_w": w(keys[2], (c.q_lora_rank, c.num_heads * c.query_head_dim)),
        "kv_lora_a_w": w(keys[3], (c.hidden_dim, c.kv_lora_rank + c.qk_rope_head_dim)),
        "kv_lora_a_b": w(keys[4], (c.kv_lora_rank + c.qk_rope_head_dim,)),
        "kv_lora_rms_w": jnp.ones((c.kv_lora_rank,), jnp.float32),
        "kv_lora_b_w": w(keys[5], (c.kv_lora_rank,
                                   c.num_kv_heads * (c.qk_nrope_head_dim + c.value_head_dim))),
        "out_w": w(keys[6], (c.num_heads * c.value_head_dim, c.hidden_dim)),
        "out_b": w(keys[7], (c.hidden_dim,)),
    }


# ----------------------------------------------------------------------------
# Pure-jnp reference (mirrors the PyTorch forward) for the self-check
# ----------------------------------------------------------------------------
def _reference_forward(params, hidden_states, cfg):
    c = cfg
    B, S, H = hidden_states.shape
    G = c.num_heads // c.num_kv_heads
    x = hidden_states

    def lin(v, w, b=None):
        y = v @ w
        return y + b if b is not None else y

    def rms(v, g):
        return v * jax.lax.rsqrt(jnp.mean(v * v, -1, keepdims=True) + c.eps) * g

    q_a = lin(x, params["q_lora_a_w"], params["q_lora_a_b"])
    q = lin(rms(q_a, params["q_lora_rms_w"]), params["q_lora_b_w"])
    q = q.reshape(B, S, c.num_heads, c.query_head_dim).transpose(0, 2, 1, 3)
    q_pass, q_rope = q[..., :c.qk_nrope_head_dim], q[..., c.qk_nrope_head_dim:]

    kv_a = lin(x, params["kv_lora_a_w"], params["kv_lora_a_b"])
    k_pass, k_rope = kv_a[..., :c.kv_lora_rank], kv_a[..., c.kv_lora_rank:]
    kv_b = lin(rms(k_pass, params["kv_lora_rms_w"]), params["kv_lora_b_w"])
    kv_b = kv_b.reshape(B, S, c.num_kv_heads, -1).transpose(0, 2, 1, 3)
    k_nr, v = kv_b[..., :c.qk_nrope_head_dim], kv_b[..., c.qk_nrope_head_dim:]

    sin, cos = rope_sin_cos(S, c.qk_rope_head_dim, c.base)
    k_rope = k_rope.reshape(B, 1, S, c.qk_rope_head_dim)
    q_rope = apply_rope(q_rope, sin, cos)
    k_rope = apply_rope(k_rope, sin, cos)
    k_rope = jnp.broadcast_to(k_rope, (B, c.num_kv_heads, S, c.qk_rope_head_dim))

    qs = jnp.concatenate([q_pass, q_rope], -1)
    ks = jnp.repeat(jnp.concatenate([k_nr, k_rope], -1), G, axis=1)
    vs = jnp.repeat(v, G, axis=1)

    scale = 1.0 / math.sqrt(float(c.query_head_dim))
    s = jnp.einsum("bhqd,bhkd->bhqk", qs, ks) * scale
    w = jax.nn.softmax(s, axis=-1)
    o = jnp.einsum("bhqk,bhkd->bhqd", w, vs)
    o = o.transpose(0, 2, 1, 3).reshape(B, S, -1)
    out = lin(o, params["out_w"], params["out_b"])
    return out, w


if __name__ == "__main__":
    cfg = MLAConfig()
    key = jax.random.PRNGKey(0)
    k_params, k_x = jax.random.split(key)
    params = init_params(k_params, cfg)

    B, S = 2, cfg.max_len
    hidden_states = jax.random.normal(k_x, (B, S, cfg.hidden_dim), dtype=jnp.float32)

    out, attn_w = mla_forward(params, hidden_states, cfg, attention_mask=None,
                              return_attn_weights=True)
    out = jax.block_until_ready(out)
    attn_w = jax.block_until_ready(attn_w)

    ref_out, ref_w = _reference_forward(params, hidden_states, cfg)
    assert out.shape == (B, S, cfg.hidden_dim)
    assert attn_w.shape == (B, cfg.num_heads, S, S)
    # Tolerances account for bf16 MXU inputs (f32 accumulation) vs the f32
    # reference; the f32 reference and elementwise f32 math bound the error.
    assert jnp.allclose(out, ref_out, atol=2e-2, rtol=2e-2), \
        float(jnp.max(jnp.abs(out - ref_out)))
    assert jnp.allclose(attn_w, ref_w, atol=1e-2, rtol=1e-2), \
        float(jnp.max(jnp.abs(attn_w - ref_w)))

    print("KERNEL_OK")
</pallas_src>

<mosaic_0001>
module attributes {stable_mosaic.version = 11 : i64} {
  func.func @_mla_fused_kernel(%arg0: i32, %arg1: memref<1x8x32xf32, #tpu.memory_space<vmem>>, %arg2: memref<32x40xbf16, #tpu.memory_space<vmem>>, %arg3: memref<1x40xf32, #tpu.memory_space<vmem>>, %arg4: memref<1x16xf32, #tpu.memory_space<vmem>>, %arg5: memref<1x16xf32, #tpu.memory_space<vmem>>, %arg6: memref<16x64xbf16, #tpu.memory_space<vmem>>, %arg7: memref<16x48xbf16, #tpu.memory_space<vmem>>, %arg8: memref<8x8xf32, #tpu.memory_space<vmem>>, %arg9: memref<8x8xf32, #tpu.memory_space<vmem>>, %arg10: memref<64x32xbf16, #tpu.memory_space<vmem>>, %arg11: memref<1x32xf32, #tpu.memory_space<vmem>>, %arg12: memref<1x8x32xf32, #tpu.memory_space<vmem>>, %arg13: memref<1x8x32xf32, #tpu.memory_space<vmem>>) attributes {dimension_semantics = [#tpu.dimension_semantics<parallel>], iteration_bounds = array<i64: 2>, scalar_prefetch = 0 : i64, scratch_operands = 0 : i64, tpu.core_type = #tpu.core_type<tc>, window_params = [{transform_indices = @transform_0, window_bounds = array<i64: 1, 8, 32>}, {pipeline_mode = #tpu.pipeline_mode<synchronous>, transform_indices = @transform_1, window_bounds = array<i64: 32, 40>}, {pipeline_mode = #tpu.pipeline_mode<synchronous>, transform_indices = @transform_2, window_bounds = array<i64: 1, 40>}, {pipeline_mode = #tpu.pipeline_mode<synchronous>, transform_indices = @transform_3, window_bounds = array<i64: 1, 16>}, {pipeline_mode = #tpu.pipeline_mode<synchronous>, transform_indices = @transform_4, window_bounds = array<i64: 1, 16>}, {pipeline_mode = #tpu.pipeline_mode<synchronous>, transform_indices = @transform_5, window_bounds = array<i64: 16, 64>}, {pipeline_mode = #tpu.pipeline_mode<synchronous>, transform_indices = @transform_6, window_bounds = array<i64: 16, 48>}, {pipeline_mode = #tpu.pipeline_mode<synchronous>, transform_indices = @transform_7, window_bounds = array<i64: 8, 8>}, {pipeline_mode = #tpu.pipeline_mode<synchronous>, transform_indices = @transform_8, window_bounds = array<i64: 8, 8>}, {pipeline_mode = #tpu.pipeline_mode<synchronous>, transform_indices = @transform_9, window_bounds = array<i64: 64, 32>}, {pipeline_mode = #tpu.pipeline_mode<synchronous>, transform_indices = @transform_10, window_bounds = array<i64: 1, 32>}, {transform_indices = @transform_11, window_bounds = array<i64: 1, 8, 32>}, {transform_indices = @transform_12, window_bounds = array<i64: 1, 8, 32>}]} {
    %c0 = arith.constant 0 : index
    %c0_0 = arith.constant 0 : index
    %c0_1 = arith.constant 0 : index
    %0 = vector.load %arg1[%c0, %c0_0, %c0_1] : memref<1x8x32xf32, #tpu.memory_space<vmem>>, vector<1x8x32xf32>
    %1 = vector.shape_cast %0 : vector<1x8x32xf32> to vector<8x32xf32>
    %2 = arith.truncf %1 : vector<8x32xf32> to vector<8x32xbf16>
    %c0_2 = arith.constant 0 : index
    %c0_3 = arith.constant 0 : index
    %3 = vector.load %arg2[%c0_2, %c0_3] : memref<32x40xbf16, #tpu.memory_space<vmem>>, vector<32x40xbf16>
    %cst = arith.constant dense<0.000000e+00> : vector<8x40xf32>
    %4 = tpu.matmul %2, %3, %cst {dimension_numbers = #tpu.dot_dimension_numbers<[1], [0], [0], [1], [0, 0, 1, 1], [], []>} : vector<8x32xbf16>, vector<32x40xbf16>, vector<8x40xf32> -> vector<8x40xf32>
    %c0_4 = arith.constant 0 : index
    %c0_5 = arith.constant 0 : index
    %5 = vector.load %arg3[%c0_4, %c0_5] : memref<1x40xf32, #tpu.memory_space<vmem>>, vector<1x40xf32>
    %6 = vector.broadcast %5 : vector<1x40xf32> to vector<8x40xf32>
    %7 = arith.addf %4, %6 : vector<8x40xf32>
    %8 = vector.extract_strided_slice %7 {offsets = [0, 0], sizes = [8, 16], strides = [1, 1]} : vector<8x40xf32> to vector<8x16xf32>
    %9 = vector.extract_strided_slice %7 {offsets = [0, 16], sizes = [8, 16], strides = [1, 1]} : vector<8x40xf32> to vector<8x16xf32>
    %10 = vector.extract_strided_slice %7 {offsets = [0, 32], sizes = [8, 8], strides = [1, 1]} : vector<8x40xf32> to vector<8x8xf32>
    %c0_6 = arith.constant 0 : index
    %c0_7 = arith.constant 0 : index
    %11 = vector.load %arg4[%c0_6, %c0_7] : memref<1x16xf32, #tpu.memory_space<vmem>>, vector<1x16xf32>
    %12 = arith.mulf %8, %8 : vector<8x16xf32>
    %cst_8 = arith.constant dense<0.000000e+00> : vector<8xf32>
    %13 = vector.multi_reduction <add>, %12, %cst_8 [1] : vector<8x16xf32> to vector<8xf32>
    %14 = vector.shape_cast %13 : vector<8xf32> to vector<8x1xf32>
    %cst_9 = arith.constant 1.600000e+01 : f32
    %15 = vector.broadcast %cst_9 : f32 to vector<8x1xf32>
    %16 = arith.divf %14, %15 : vector<8x1xf32>
    %cst_10 = arith.constant 9.99999997E-7 : f32
    %17 = vector.broadcast %cst_10 : f32 to vector<8x1xf32>
    %18 = arith.addf %16, %17 : vector<8x1xf32>
    %19 = math.rsqrt %18 : vector<8x1xf32>
    %20 = vector.broadcast %19 : vector<8x1xf32> to vector<8x16xf32>
    %21 = arith.mulf %8, %20 : vector<8x16xf32>
    %22 = vector.broadcast %11 : vector<1x16xf32> to vector<8x16xf32>
    %23 = arith.mulf %21, %22 : vector<8x16xf32>
    %c0_11 = arith.constant 0 : index
    %c0_12 = arith.constant 0 : index
    %24 = vector.load %arg5[%c0_11, %c0_12] : memref<1x16xf32, #tpu.memory_space<vmem>>, vector<1x16xf32>
    %25 = arith.mulf %9, %9 : vector<8x16xf32>
    %cst_13 = arith.constant dense<0.000000e+00> : vector<8xf32>
    %26 = vector.multi_reduction <add>, %25, %cst_13 [1] : vector<8x16xf32> to vector<8xf32>
    %27 = vector.shape_cast %26 : vector<8xf32> to vector<8x1xf32>
    %cst_14 = arith.constant 1.600000e+01 : f32
    %28 = vector.broadcast %cst_14 : f32 to vector<8x1xf32>
    %29 = arith.divf %27, %28 : vector<8x1xf32>
    %cst_15 = arith.constant 9.99999997E-7 : f32
    %30 = vector.broadcast %cst_15 : f32 to vector<8x1xf32>
    %31 = arith.addf %29, %30 : vector<8x1xf32>
    %32 = math.rsqrt %31 : vector<8x1xf32>
    %33 = vector.broadcast %32 : vector<8x1xf32> to vector<8x16xf32>
    %34 = arith.mulf %9, %33 : vector<8x16xf32>
    %35 = vector.broadcast %24 : vector<1x16xf32> to vector<8x16xf32>
    %36 = arith.mulf %34, %35 : vector<8x16xf32>
    %37 = arith.truncf %23 : vector<8x16xf32> to vector<8x16xbf16>
    %c0_16 = arith.constant 0 : index
    %c0_17 = arith.constant 0 : index
    %38 = vector.load %arg6[%c0_16, %c0_17] : memref<16x64xbf16, #tpu.memory_space<vmem>>, vector<16x64xbf16>
    %cst_18 = arith.constant dense<0.000000e+00> : vector<8x64xf32>
    %39 = tpu.matmul %37, %38, %cst_18 {dimension_numbers = #tpu.dot_dimension_numbers<[1], [0], [0], [1], [0, 0, 1, 1], [], []>} : vector<8x16xbf16>, vector<16x64xbf16>, vector<8x64xf32> -> vector<8x64xf32>
    %40 = arith.truncf %36 : vector<8x16xf32> to vector<8x16xbf16>
    %c0_19 = arith.constant 0 : index
    %c0_20 = arith.constant 0 : index
    %41 = vector.load %arg7[%c0_19, %c0_20] : memref<16x48xbf16, #tpu.memory_space<vmem>>, vector<16x48xbf16>
    %cst_21 = arith.constant dense<0.000000e+00> : vector<8x48xf32>
    %42 = tpu.matmul %40, %41, %cst_21 {dimension_numbers = #tpu.dot_dimension_numbers<[1], [0], [0], [1], [0, 0, 1, 1], [], []>} : vector<8x16xbf16>, vector<16x48xbf16>, vector<8x48xf32> -> vector<8x48xf32>
    %c0_22 = arith.constant 0 : index
    %c0_23 = arith.constant 0 : index
    %43 = vector.load %arg8[%c0_22, %c0_23] : memref<8x8xf32, #tpu.memory_space<vmem>>, vector<8x8xf32>
    %c0_24 = arith.constant 0 : index
    %c0_25 = arith.constant 0 : index
    %44 = vector.load %arg9[%c0_24, %c0_25] : memref<8x8xf32, #tpu.memory_space<vmem>>, vector<8x8xf32>
    %45 = arith.mulf %10, %43 : vector<8x8xf32>
    %46 = vector.extract_strided_slice %10 {offsets = [0, 4], sizes = [8, 4], strides = [1, 1]} : vector<8x8xf32> to vector<8x4xf32>
    %cst_26 = arith.constant 0.000000e+00 : f32
    %47 = vector.broadcast %cst_26 : f32 to vector<8x4xf32>
    %48 = arith.subf %47, %46 : vector<8x4xf32>
    %49 = vector.extract_strided_slice %10 {offsets = [0, 0], sizes = [8, 4], strides = [1, 1]} : vector<8x8xf32> to vector<8x4xf32>
    %50 = tpu.concatenate %48, %49 in 1 : vector<8x4xf32>, vector<8x4xf32> -> vector<8x8xf32>
    %51 = arith.mulf %50, %44 : vector<8x8xf32>
    %52 = arith.addf %45, %51 : vector<8x8xf32>
    %53 = vector.extract_strided_slice %42 {offsets = [0, 0], sizes = [8, 8], strides = [1, 1]} : vector<8x48xf32> to vector<8x8xf32>
    %54 = vector.extract_strided_slice %42 {offsets = [0, 8], sizes = [8, 16], strides = [1, 1]} : vector<8x48xf32> to vector<8x16xf32>
    %55 = tpu.concatenate %53, %52 in 1 : vector<8x8xf32>, vector<8x8xf32> -> vector<8x16xf32>
    %56 = vector.extract_strided_slice %42 {offsets = [0, 24], sizes = [8, 8], strides = [1, 1]} : vector<8x48xf32> to vector<8x8xf32>
    %57 = vector.extract_strided_slice %42 {offsets = [0, 32], sizes = [8, 16], strides = [1, 1]} : vector<8x48xf32> to vector<8x16xf32>
    %58 = tpu.concatenate %56, %52 in 1 : vector<8x8xf32>, vector<8x8xf32> -> vector<8x16xf32>
    %59 = vector.extract_strided_slice %39 {offsets = [0, 0], sizes = [8, 8], strides = [1, 1]} : vector<8x64xf32> to vector<8x8xf32>
    %60 = vector.extract_strided_slice %39 {offsets = [0, 8], sizes = [8, 8], strides = [1, 1]} : vector<8x64xf32> to vector<8x8xf32>
    %61 = arith.mulf %60, %43 : vector<8x8xf32>
    %62 = vector.extract_strided_slice %60 {offsets = [0, 4], sizes = [8, 4], strides = [1, 1]} : vector<8x8xf32> to vector<8x4xf32>
    %cst_27 = arith.constant 0.000000e+00 : f32
    %63 = vector.broadcast %cst_27 : f32 to vector<8x4xf32>
    %64 = arith.subf %63, %62 : vector<8x4xf32>
    %65 = vector.extract_strided_slice %60 {offsets = [0, 0], sizes = [8, 4], strides = [1, 1]} : vector<8x8xf32> to vector<8x4xf32>
    %66 = tpu.concatenate %64, %65 in 1 : vector<8x4xf32>, vector<8x4xf32> -> vector<8x8xf32>
    %67 = arith.mulf %66, %44 : vector<8x8xf32>
    %68 = arith.addf %61, %67 : vector<8x8xf32>
    %69 = tpu.concatenate %59, %68 in 1 : vector<8x8xf32>, vector<8x8xf32> -> vector<8x16xf32>
    %70 = arith.truncf %69 : vector<8x16xf32> to vector<8x16xbf16>
    %71 = arith.truncf %55 : vector<8x16xf32> to vector<8x16xbf16>
    %cst_28 = arith.constant dense<0.000000e+00> : vector<8x8xf32>
    %72 = tpu.matmul %70, %71, %cst_28 {dimension_numbers = #tpu.dot_dimension_numbers<[1], [1], [0], [0], [0, 0, 1, 0], [], []>} : vector<8x16xbf16>, vector<8x16xbf16>, vector<8x8xf32> -> vector<8x8xf32>
    %cst_29 = arith.constant 2.500000e-01 : f32
    %73 = vector.broadcast %cst_29 : f32 to vector<8x8xf32>
    %74 = arith.mulf %72, %73 : vector<8x8xf32>
    %cst_30 = arith.constant dense<0xFF800000> : vector<8xf32>
    %75 = vector.multi_reduction <maximumf>, %74, %cst_30 [1] : vector<8x8xf32> to vector<8xf32>
    %76 = vector.shape_cast %75 : vector<8xf32> to vector<8x1xf32>
    %77 = vector.broadcast %76 : vector<8x1xf32> to vector<8x8xf32>
    %78 = arith.subf %74, %77 : vector<8x8xf32>
    %79 = math.exp %78 : vector<8x8xf32>
    %cst_31 = arith.constant dense<0.000000e+00> : vector<8xf32>
    %80 = vector.multi_reduction <add>, %79, %cst_31 [1] : vector<8x8xf32> to vector<8xf32>
    %81 = vector.shape_cast %80 : vector<8xf32> to vector<8x1xf32>
    %82 = vector.broadcast %81 : vector<8x1xf32> to vector<8x8xf32>
    %83 = arith.divf %79, %82 : vector<8x8xf32>
    %84 = arith.truncf %83 : vector<8x8xf32> to vector<8x8xbf16>
    %85 = arith.truncf %54 : vector<8x16xf32> to vector<8x16xbf16>
    %cst_32 = arith.constant dense<0.000000e+00> : vector<8x16xf32>
    %86 = tpu.matmul %84, %85, %cst_32 {dimension_numbers = #tpu.dot_dimension_numbers<[1], [0], [0], [1], [0, 0, 1, 1], [], []>} : vector<8x8xbf16>, vector<8x16xbf16>, vector<8x16xf32> -> vector<8x16xf32>
    %87 = vector.extract_strided_slice %39 {offsets = [0, 16], sizes = [8, 8], strides = [1, 1]} : vector<8x64xf32> to vector<8x8xf32>
    %88 = vector.extract_strided_slice %39 {offsets = [0, 24], sizes = [8, 8], strides = [1, 1]} : vector<8x64xf32> to vector<8x8xf32>
    %89 = arith.mulf %88, %43 : vector<8x8xf32>
    %90 = vector.extract_strided_slice %88 {offsets = [0, 4], sizes = [8, 4], strides = [1, 1]} : vector<8x8xf32> to vector<8x4xf32>
    %cst_33 = arith.constant 0.000000e+00 : f32
    %91 = vector.broadcast %cst_33 : f32 to vector<8x4xf32>
    %92 = arith.subf %91, %90 : vector<8x4xf32>
    %93 = vector.extract_strided_slice %88 {offsets = [0, 0], sizes = [8, 4], strides = [1, 1]} : vector<8x8xf32> to vector<8x4xf32>
    %94 = tpu.concatenate %92, %93 in 1 : vector<8x4xf32>, vector<8x4xf32> -> vector<8x8xf32>
    %95 = arith.mulf %94, %44 : vector<8x8xf32>
    %96 = arith.addf %89, %95 : vector<8x8xf32>
    %97 = tpu.concatenate %87, %96 in 1 : vector<8x8xf32>, vector<8x8xf32> -> vector<8x16xf32>
    %98 = arith.truncf %97 : vector<8x16xf32> to vector<8x16xbf16>
    %99 = arith.truncf %55 : vector<8x16xf32> to vector<8x16xbf16>
    %cst_34 = arith.constant dense<0.000000e+00> : vector<8x8xf32>
    %100 = tpu.matmul %98, %99, %cst_34 {dimension_numbers = #tpu.dot_dimension_numbers<[1], [1], [0], [0], [0, 0, 1, 0], [], []>} : vector<8x16xbf16>, vector<8x16xbf16>, vector<8x8xf32> -> vector<8x8xf32>
    %cst_35 = arith.constant 2.500000e-01 : f32
    %101 = vector.broadcast %cst_35 : f32 to vector<8x8xf32>
    %102 = arith.mulf %100, %101 : vector<8x8xf32>
    %cst_36 = arith.constant dense<0xFF800000> : vector<8xf32>
    %103 = vector.multi_reduction <maximumf>, %102, %cst_36 [1] : vector<8x8xf32> to vector<8xf32>
    %104 = vector.shape_cast %103 : vector<8xf32> to vector<8x1xf32>
    %105 = vector.broadcast %104 : vector<8x1xf32> to vector<8x8xf32>
    %106 = arith.subf %102, %105 : vector<8x8xf32>
    %107 = math.exp %106 : vector<8x8xf32>
    %cst_37 = arith.constant dense<0.000000e+00> : vector<8xf32>
    %108 = vector.multi_reduction <add>, %107, %cst_37 [1] : vector<8x8xf32> to vector<8xf32>
    %109 = vector.shape_cast %108 : vector<8xf32> to vector<8x1xf32>
    %110 = vector.broadcast %109 : vector<8x1xf32> to vector<8x8xf32>
    %111 = arith.divf %107, %110 : vector<8x8xf32>
    %112 = arith.truncf %111 : vector<8x8xf32> to vector<8x8xbf16>
    %113 = arith.truncf %54 : vector<8x16xf32> to vector<8x16xbf16>
    %cst_38 = arith.constant dense<0.000000e+00> : vector<8x16xf32>
    %114 = tpu.matmul %112, %113, %cst_38 {dimension_numbers = #tpu.dot_dimension_numbers<[1], [0], [0], [1], [0, 0, 1, 1], [], []>} : vector<8x8xbf16>, vector<8x16xbf16>, vector<8x16xf32> -> vector<8x16xf32>
    %115 = vector.extract_strided_slice %39 {offsets = [0, 32], sizes = [8, 8], strides = [1, 1]} : vector<8x64xf32> to vector<8x8xf32>
    %116 = vector.extract_strided_slice %39 {offsets = [0, 40], sizes = [8, 8], strides = [1, 1]} : vector<8x64xf32> to vector<8x8xf32>
    %117 = arith.mulf %116, %43 : vector<8x8xf32>
    %118 = vector.extract_strided_slice %116 {offsets = [0, 4], sizes = [8, 4], strides = [1, 1]} : vector<8x8xf32> to vector<8x4xf32>
    %cst_39 = arith.constant 0.000000e+00 : f32
    %119 = vector.broadcast %cst_39 : f32 to vector<8x4xf32>
    %120 = arith.subf %119, %118 : vector<8x4xf32>
    %121 = vector.extract_strided_slice %116 {offsets = [0, 0], sizes = [8, 4], strides = [1, 1]} : vector<8x8xf32> to vector<8x4xf32>
    %122 = tpu.concatenate %120, %121 in 1 : vector<8x4xf32>, vector<8x4xf32> -> vector<8x8xf32>
    %123 = arith.mulf %122, %44 : vector<8x8xf32>
    %124 = arith.addf %117, %123 : vector<8x8xf32>
    %125 = tpu.concatenate %115, %124 in 1 : vector<8x8xf32>, vector<8x8xf32> -> vector<8x16xf32>
    %126 = arith.truncf %125 : vector<8x16xf32> to vector<8x16xbf16>
    %127 = arith.truncf %58 : vector<8x16xf32> to vector<8x16xbf16>
    %cst_40 = arith.constant dense<0.000000e+00> : vector<8x8xf32>
    %128 = tpu.matmul %126, %127, %cst_40 {dimension_numbers = #tpu.dot_dimension_numbers<[1], [1], [0], [0], [0, 0, 1, 0], [], []>} : vector<8x16xbf16>, vector<8x16xbf16>, vector<8x8xf32> -> vector<8x8xf32>
    %cst_41 = arith.constant 2.500000e-01 : f32
    %129 = vector.broadcast %cst_41 : f32 to vector<8x8xf32>
    %130 = arith.mulf %128, %129 : vector<8x8xf32>
    %cst_42 = arith.constant dense<0xFF800000> : vector<8xf32>
    %131 = vector.multi_reduction <maximumf>, %130, %cst_42 [1] : vector<8x8xf32> to vector<8xf32>
    %132 = vector.shape_cast %131 : vector<8xf32> to vector<8x1xf32>
    %133 = vector.broadcast %132 : vector<8x1xf32> to vector<8x8xf32>
    %134 = arith.subf %130, %133 : vector<8x8xf32>
    %135 = math.exp %134 : vector<8x8xf32>
    %cst_43 = arith.constant dense<0.000000e+00> : vector<8xf32>
    %136 = vector.multi_reduction <add>, %135, %cst_43 [1] : vector<8x8xf32> to vector<8xf32>
    %137 = vector.shape_cast %136 : vector<8xf32> to vector<8x1xf32>
    %138 = vector.broadcast %137 : vector<8x1xf32> to vector<8x8xf32>
    %139 = arith.divf %135, %138 : vector<8x8xf32>
    %140 = arith.truncf %139 : vector<8x8xf32> to vector<8x8xbf16>
    %141 = arith.truncf %57 : vector<8x16xf32> to vector<8x16xbf16>
    %cst_44 = arith.constant dense<0.000000e+00> : vector<8x16xf32>
    %142 = tpu.matmul %140, %141, %cst_44 {dimension_numbers = #tpu.dot_dimension_numbers<[1], [0], [0], [1], [0, 0, 1, 1], [], []>} : vector<8x8xbf16>, vector<8x16xbf16>, vector<8x16xf32> -> vector<8x16xf32>
    %143 = vector.extract_strided_slice %39 {offsets = [0, 48], sizes = [8, 8], strides = [1, 1]} : vector<8x64xf32> to vector<8x8xf32>
    %144 = vector.extract_strided_slice %39 {offsets = [0, 56], sizes = [8, 8], strides = [1, 1]} : vector<8x64xf32> to vector<8x8xf32>
    %145 = arith.mulf %144, %43 : vector<8x8xf32>
    %146 = vector.extract_strided_slice %144 {offsets = [0, 4], sizes = [8, 4], strides = [1, 1]} : vector<8x8xf32> to vector<8x4xf32>
    %cst_45 = arith.constant 0.000000e+00 : f32
    %147 = vector.broadcast %cst_45 : f32 to vector<8x4xf32>
    %148 = arith.subf %147, %146 : vector<8x4xf32>
    %149 = vector.extract_strided_slice %144 {offsets = [0, 0], sizes = [8, 4], strides = [1, 1]} : vector<8x8xf32> to vector<8x4xf32>
    %150 = tpu.concatenate %148, %149 in 1 : vector<8x4xf32>, vector<8x4xf32> -> vector<8x8xf32>
    %151 = arith.mulf %150, %44 : vector<8x8xf32>
    %152 = arith.addf %145, %151 : vector<8x8xf32>
    %153 = tpu.concatenate %143, %152 in 1 : vector<8x8xf32>, vector<8x8xf32> -> vector<8x16xf32>
    %154 = arith.truncf %153 : vector<8x16xf32> to vector<8x16xbf16>
    %155 = arith.truncf %58 : vector<8x16xf32> to vector<8x16xbf16>
    %cst_46 = arith.constant dense<0.000000e+00> : vector<8x8xf32>
    %156 = tpu.matmul %154, %155, %cst_46 {dimension_numbers = #tpu.dot_dimension_numbers<[1], [1], [0], [0], [0, 0, 1, 0], [], []>} : vector<8x16xbf16>, vector<8x16xbf16>, vector<8x8xf32> -> vector<8x8xf32>
    %cst_47 = arith.constant 2.500000e-01 : f32
    %157 = vector.broadcast %cst_47 : f32 to vector<8x8xf32>
    %158 = arith.mulf %156, %157 : vector<8x8xf32>
    %cst_48 = arith.constant dense<0xFF800000> : vector<8xf32>
    %159 = vector.multi_reduction <maximumf>, %158, %cst_48 [1] : vector<8x8xf32> to vector<8xf32>
    %160 = vector.shape_cast %159 : vector<8xf32> to vector<8x1xf32>
    %161 = vector.broadcast %160 : vector<8x1xf32> to vector<8x8xf32>
    %162 = arith.subf %158, %161 : vector<8x8xf32>
    %163 = math.exp %162 : vector<8x8xf32>
    %cst_49 = arith.constant dense<0.000000e+00> : vector<8xf32>
    %164 = vector.multi_reduction <add>, %163, %cst_49 [1] : vector<8x8xf32> to vector<8xf32>
    %165 = vector.shape_cast %164 : vector<8xf32> to vector<8x1xf32>
    %166 = vector.broadcast %165 : vector<8x1xf32> to vector<8x8xf32>
    %167 = arith.divf %163, %166 : vector<8x8xf32>
    %168 = arith.truncf %167 : vector<8x8xf32> to vector<8x8xbf16>
    %169 = arith.truncf %57 : vector<8x16xf32> to vector<8x16xbf16>
    %cst_50 = arith.constant dense<0.000000e+00> : vector<8x16xf32>
    %170 = tpu.matmul %168, %169, %cst_50 {dimension_numbers = #tpu.dot_dimension_numbers<[1], [0], [0], [1], [0, 0, 1, 1], [], []>} : vector<8x8xbf16>, vector<8x16xbf16>, vector<8x16xf32> -> vector<8x16xf32>
    %171 = tpu.concatenate %86, %114, %142, %170 in 1 : vector<8x16xf32>, vector<8x16xf32>, vector<8x16xf32>, vector<8x16xf32> -> vector<8x64xf32>
    %172 = arith.truncf %171 : vector<8x64xf32> to vector<8x64xbf16>
    %c0_51 = arith.constant 0 : index
    %c0_52 = arith.constant 0 : index
    %173 = vector.load %arg10[%c0_51, %c0_52] : memref<64x32xbf16, #tpu.memory_space<vmem>>, vector<64x32xbf16>
    %cst_53 = arith.constant dense<0.000000e+00> : vector<8x32xf32>
    %174 = tpu.matmul %172, %173, %cst_53 {dimension_numbers = #tpu.dot_dimension_numbers<[1], [0], [0], [1], [0, 0, 1, 1], [], []>} : vector<8x64xbf16>, vector<64x32xbf16>, vector<8x32xf32> -> vector<8x32xf32>
    %c0_54 = arith.constant 0 : index
    %c0_55 = arith.constant 0 : index
    %175 = vector.load %arg11[%c0_54, %c0_55] : memref<1x32xf32, #tpu.memory_space<vmem>>, vector<1x32xf32>
    %176 = vector.broadcast %175 : vector<1x32xf32> to vector<8x32xf32>
    %177 = arith.addf %174, %176 : vector<8x32xf32>
    %c0_56 = arith.constant 0 : index
    %c0_57 = arith.constant 0 : index
    %c0_58 = arith.constant 0 : index
    %178 = vector.load %arg12[%c0_56, %c0_57, %c0_58] : memref<1x8x32xf32, #tpu.memory_space<vmem>>, vector<1x8x32xf32>
    %179 = vector.shape_cast %178 : vector<1x8x32xf32> to vector<8x32xf32>
    %180 = vector.shape_cast %177 : vector<8x32xf32> to vector<1x8x32xf32>
    tpu.vector_store %arg12[%c0_56, %c0_57, %c0_58], %180 {strides = array<i32>} : memref<1x8x32xf32, #tpu.memory_space<vmem>>, vector<1x8x32xf32>,
    %181 = tpu.concatenate %83, %111, %139, %167 in 1 : vector<8x8xf32>, vector<8x8xf32>, vector<8x8xf32>, vector<8x8xf32> -> vector<8x32xf32>
    %c0_59 = arith.constant 0 : index
    %c0_60 = arith.constant 0 : index
    %c0_61 = arith.constant 0 : index
    %182 = vector.load %arg13[%c0_59, %c0_60, %c0_61] : memref<1x8x32xf32, #tpu.memory_space<vmem>>, vector<1x8x32xf32>
    %183 = vector.shape_cast %182 : vector<1x8x32xf32> to vector<8x32xf32>
    %184 = vector.shape_cast %181 : vector<8x32xf32> to vector<1x8x32xf32>
    tpu.vector_store %arg13[%c0_59, %c0_60, %c0_61], %184 {strides = array<i32>} : memref<1x8x32xf32, #tpu.memory_space<vmem>>, vector<1x8x32xf32>,
    return
  }
  func.func @transform_0(%arg0: i32) -> (i32, i32, i32) {
    %c0_i32 = arith.constant 0 : i32
    %c0_i32_0 = arith.constant 0 : i32
    %c0_i32_1 = arith.constant 0 : i32
    return %arg0, %c0_i32, %c0_i32_0 : i32, i32, i32
  }
  func.func @transform_1(%arg0: i32) -> (i32, i32) {
    %c0_i32 = arith.constant 0 : i32
    %c0_i32_0 = arith.constant 0 : i32
    %c0_i32_1 = arith.constant 0 : i32
    return %c0_i32, %c0_i32_0 : i32, i32
  }
  func.func @transform_2(%arg0: i32) -> (i32, i32) {
    %c0_i32 = arith.constant 0 : i32
    %c0_i32_0 = arith.constant 0 : i32
    %c0_i32_1 = arith.constant 0 : i32
    return %c0_i32, %c0_i32_0 : i32, i32
  }
  func.func @transform_3(%arg0: i32) -> (i32, i32) {
    %c0_i32 = arith.constant 0 : i32
    %c0_i32_0 = arith.constant 0 : i32
    %c0_i32_1 = arith.constant 0 : i32
    return %c0_i32, %c0_i32_0 : i32, i32
  }
  func.func @transform_4(%arg0: i32) -> (i32, i32) {
    %c0_i32 = arith.constant 0 : i32
    %c0_i32_0 = arith.constant 0 : i32
    %c0_i32_1 = arith.constant 0 : i32
    return %c0_i32, %c0_i32_0 : i32, i32
  }
  func.func @transform_5(%arg0: i32) -> (i32, i32) {
    %c0_i32 = arith.constant 0 : i32
    %c0_i32_0 = arith.constant 0 : i32
    %c0_i32_1 = arith.constant 0 : i32
    return %c0_i32, %c0_i32_0 : i32, i32
  }
  func.func @transform_6(%arg0: i32) -> (i32, i32) {
    %c0_i32 = arith.constant 0 : i32
    %c0_i32_0 = arith.constant 0 : i32
    %c0_i32_1 = arith.constant 0 : i32
    return %c0_i32, %c0_i32_0 : i32, i32
  }
  func.func @transform_7(%arg0: i32) -> (i32, i32) {
    %c0_i32 = arith.constant 0 : i32
    %c0_i32_0 = arith.constant 0 : i32
    %c0_i32_1 = arith.constant 0 : i32
    return %c0_i32, %c0_i32_0 : i32, i32
  }
  func.func @transform_8(%arg0: i32) -> (i32, i32) {
    %c0_i32 = arith.constant 0 : i32
    %c0_i32_0 = arith.constant 0 : i32
    %c0_i32_1 = arith.constant 0 : i32
    return %c0_i32, %c0_i32_0 : i32, i32
  }
  func.func @transform_9(%arg0: i32) -> (i32, i32) {
    %c0_i32 = arith.constant 0 : i32
    %c0_i32_0 = arith.constant 0 : i32
    %c0_i32_1 = arith.constant 0 : i32
    return %c0_i32, %c0_i32_0 : i32, i32
  }
  func.func @transform_10(%arg0: i32) -> (i32, i32) {
    %c0_i32 = arith.constant 0 : i32
    %c0_i32_0 = arith.constant 0 : i32
    %c0_i32_1 = arith.constant 0 : i32
    return %c0_i32, %c0_i32_0 : i32, i32
  }
  func.func @transform_11(%arg0: i32) -> (i32, i32, i32) {
    %c0_i32 = arith.constant 0 : i32
    %c0_i32_0 = arith.constant 0 : i32
    %c0_i32_1 = arith.constant 0 : i32
    return %arg0, %c0_i32, %c0_i32_0 : i32, i32, i32
  }
  func.func @transform_12(%arg0: i32) -> (i32, i32, i32) {
    %c0_i32 = arith.constant 0 : i32
    %c0_i32_0 = arith.constant 0 : i32
    %c0_i32_1 = arith.constant 0 : i32
    return %arg0, %c0_i32, %c0_i32_0 : i32, i32, i32
  }
}

</mosaic_0001>

<llo_original>
// kernel: tpu_custom_call.1
$region0: #{tpu_custom_call.1}
  #allocation0 [shape = 'u32[]', space=smem, size = 0x4, offset = 0x4, fixed_abs, tag = 'smem constant byte address 0x4 - core index']
  #allocation1 [shape = 'u32[144,128]{1,0:T(1,128)}', space=vmem, size = 0x12000, scoped, tag = 'internal scratch']
  %s0 = inlined_call_operand.hbm [shape: f32[2,8,32], index: 0, kind: input, shape index: {}]
  %s1 = inlined_call_operand.hbm [shape: bf16[32,40], index: 1, kind: input, shape index: {}]
  %s2 = inlined_call_operand.hbm [shape: f32[1,40], index: 2, kind: input, shape index: {}]
  %s3 = inlined_call_operand.hbm [shape: f32[1,16], index: 3, kind: input, shape index: {}]
  %s4 = inlined_call_operand.hbm [shape: f32[1,16], index: 4, kind: input, shape index: {}]
  %s5 = inlined_call_operand.hbm [shape: bf16[16,64], index: 5, kind: input, shape index: {}]
  %s6 = inlined_call_operand.hbm [shape: bf16[16,48], index: 6, kind: input, shape index: {}]
  %s7 = inlined_call_operand.hbm [shape: f32[8,8], index: 7, kind: input, shape index: {}]
  %s8 = inlined_call_operand.hbm [shape: f32[8,8], index: 8, kind: input, shape index: {}]
  %s9 = inlined_call_operand.hbm [shape: bf16[64,32], index: 9, kind: input, shape index: {}]
  %s10 = inlined_call_operand.hbm [shape: f32[1,32], index: 10, kind: input, shape index: {}]
  %s11 = inlined_call_operand.hbm [shape: f32[2,8,32], index: 11, kind: output, shape index: {0}]
  %s12 = inlined_call_operand.hbm [shape: f32[2,8,32], index: 12, kind: output, shape index: {1}]
  %13 = xla_tuple %s11, %s12
  %s14 = sld [smem:[#allocation0]]
  $region129: #{tpu_custom_call.1} parent=0
    _
  %s16 = ssub.s32 1, %s14
  %s17 = scalar_select 0, %s16, %s14
  $region1: #{tpu_custom_call.1} parent=0
    #allocation2 [shape = 'u8[8192]{0}', space=vmem, size = 0x2000, scoped, tag = 'input window, operand 0']
    #allocation3 [shape = 's32[2]{0}', space=sflag, size = 0x8, scoped, tag = 'scoped memory for tpu_custom_call.1']
    #allocation4 [shape = 's32[2]{0}', space=sflag, size = 0x8, scoped, tag = 'scoped memory for tpu_custom_call.1']
    #allocation5 [shape = 'u8[8192]{0}', space=vmem, size = 0x2000, scoped, tag = 'input window, operand 1, single buffered']
    #allocation6 [shape = 's32[1]{0}', space=sflag, size = 0x4, scoped, tag = 'scoped memory for tpu_custom_call.1']
    #allocation7 [shape = 'u8[512]{0}', space=vmem, size = 0x400, scoped, tag = 'input window, operand 2, single buffered']
    #allocation8 [shape = 'u8[512]{0}', space=vmem, size = 0x400, scoped, tag = 'input window, operand 3, single buffered']
    #allocation9 [shape = 's32[1]{0}', space=sflag, size = 0x4, scoped, tag = 'scoped memory for tpu_custom_call.1']
    #allocation10 [shape = 'u8[512]{0}', space=vmem, size = 0x400, scoped, tag = 'input window, operand 4, single buffered']
    #allocation11 [shape = 'u8[4096]{0}', space=vmem, size = 0x1000, scoped, tag = 'input window, operand 5, single buffered']
    #allocation12 [shape = 's32[1]{0}', space=sflag, size = 0x4, scoped, tag = 'scoped memory for tpu_custom_call.1']
    #allocation13 [shape = 'u8[4096]{0}', space=vmem, size = 0x1000, scoped, tag = 'input window, operand 6, single buffered']
    #allocation14 [shape = 'u8[4096]{0}', space=vmem, size = 0x1000, scoped, tag = 'input window, operand 7, single buffered']
    #allocation15 [shape = 's32[1]{0}', space=sflag, size = 0x4, scoped, tag = 'scoped memory for tpu_custom_call.1']
    #allocation16 [shape = 'u8[4096]{0}', space=vmem, size = 0x1000, scoped, tag = 'input window, operand 8, single buffered']
    #allocation17 [shape = 'u8[16384]{0}', space=vmem, size = 0x4000, scoped, tag = 'input window, operand 9, single buffered']
    #allocation18 [shape = 's32[1]{0}', space=sflag, size = 0x4, scoped, tag = 'scoped memory for tpu_custom_call.1']
    #allocation19 [shape = 'u8[512]{0}', space=vmem, size = 0x400, scoped, tag = 'input window, operand 10, single buffered']
    #allocation20 [shape = 'u8[8192]{0}', space=vmem, size = 0x2000, scoped, tag = 'output window, operand 0']
    #allocation21 [shape = 'u8[8192]{0}', space=vmem, size = 0x2000, scoped, tag = 'output window, operand 1']
    #allocation22 [shape = 's32[2]{0}', space=sflag, size = 0x8, scoped, tag = 'scoped memory for tpu_custom_call.1']
    %18 = vsyncpa [#allocation3], 0
    %s19 = scalar_lea.sflag [#allocation3], 1
    %20 = vsyncpa %s19, 0
    %21 = vsyncpa [#allocation6], 0
    %22 = vsyncpa [#allocation9], 0
    %23 = vsyncpa [#allocation12], 0
    %24 = vsyncpa [#allocation15], 0
    %25 = vsyncpa [#allocation18], 0
    %26 = vsyncpa [#allocation4], 0
    %s27 = scalar_lea.sflag [#allocation4], 1
    %28 = vsyncpa %s27, 0
    %29 = vsyncpa [#allocation22], 0
    %s30 = scalar_lea.sflag [#allocation22], 1
    %31 = vsyncpa %s30, 0
    loop: start=0, step=1, limit=4
    $region2: #{tpu_custom_call.1} parent=1 // loop_pre_header
      _
    $region3: #{tpu_custom_call.1} parent=1 // loop_header
      %s33 = sphi 0, %s37
      %p34 = scmp.ge.s32.totalorder %s33, 4
      %s43 = sphi 0, %s45
      %s46 = sphi 0, %s43
      %s47 = sphi 0, %s46
      %s63 = sphi 0, %s47
      %s67 = sphi 0, %s67
      %s69 = sphi 0, %s67
      %s70 = sphi 0, %s69
      %s84 = sphi 0, %s70
      %s88 = sphi 0, %s88
      %s90 = sphi 0, %s88
      %s91 = sphi 0, %s90
      %s105 = sphi 0, %s91
      %s109 = sphi 0, %s109
      %s111 = sphi 0, %s109
      %s112 = sphi 0, %s111
      %s126 = sphi 0, %s112
      %s130 = sphi 0, %s130
      %s132 = sphi 0, %s130
      %s133 = sphi 0, %s132
      %s147 = sphi 0, %s133
      %s151 = sphi 0, %s151
      %s153 = sphi 0, %s151
      %s154 = sphi 0, %s153
      %s168 = sphi 0, %s154
      %s172 = sphi 0, %s172
      %s174 = sphi 0, %s172
      %s175 = sphi 0, %s174
      %s189 = sphi 0, %s175
      %s193 = sphi 0, %s193
      %s195 = sphi 0, %s193
      %s196 = sphi 0, %s195
      %s210 = sphi 0, %s196
      %s214 = sphi 0, %s214
      %s216 = sphi 0, %s214
      %s217 = sphi 0, %s216
      %s231 = sphi 0, %s217
      %s235 = sphi 0, %s235
      %s237 = sphi 0, %s235
      %s238 = sphi 0, %s237
      %s252 = sphi 0, %s238
      %s256 = sphi 0, %s256
      %s258 = sphi 0, %s256
      %s259 = sphi 0, %s258
      %s273 = sphi 0, %s259
      %s279 = sphi 0, %s281
      %s282 = sphi 0, %s279
      %s283 = sphi 0, %s282
      %s299 = sphi 0, %s283
      %s305 = sphi 0, %s307
      %s308 = sphi 0, %s305
      %s309 = sphi 0, %s308
      %s325 = sphi 0, %s309
    $region4: #{tpu_custom_call.1} parent=1 // loop_header_branch
      %36 = sbr.rel (%p34) target = $region8
    $region5: #{tpu_custom_call.1} parent=1 // loop_body
      %s38 = ssub.s32 %s33, 1
      %s39 = ssub.s32 %s33, 2
      %s40 = sadd.s32 %s33, 1
      %s41 = ssub.s32 %s33, %s40
      %p42 = scmp.eq.s32.totalorder %s41, 0
      %s44 = sadd.s32 %s43, 1
      %s45 = scalar_select %p42, %s43, %s44
      %p48 = pneg %p42
      %p49 = scmp.eq.s32.totalorder %s33, 1
      %p50 = por %p48, %p49
      %p51 = scmp.ne.s32.totalorder %s43, %s46
      %p52 = scmp.eq.s32.totalorder %s33, 0
      %p53 = por %p51, %p52
      %p54 = scmp.ne.s32.totalorder %s43, %s46
      %p55 = scmp.eq.s32.totalorder %s38, 1
      %p56 = por %p54, %p55
      %p57 = scmp.ne.s32.totalorder %s46, %s47
      %p58 = scmp.eq.s32.totalorder %s38, 0
      %p59 = por %p57, %p58
      %p60 = scmp.ne.s32.totalorder %s46, %s47
      %p61 = scmp.eq.s32.totalorder %s39, 1
      %p62 = por %p60, %p61
      %p64 = scmp.ne.s32.totalorder %s47, %s63
      %p65 = scmp.eq.s32.totalorder %s39, 0
      %p66 = por %p64, %p65
      %s68 = sadd.s32 %s67, 1
      %p71 = scmp.eq.s32.totalorder %s33, 1
      %p72 = scmp.ne.s32.totalorder %s67, %s69
      %p73 = scmp.eq.s32.totalorder %s33, 0
      %p74 = por %p72, %p73
      %p75 = scmp.ne.s32.totalorder %s67, %s69
      %p76 = scmp.eq.s32.totalorder %s38, 1
      %p77 = por %p75, %p76
      %p78 = scmp.ne.s32.totalorder %s69, %s70
      %p79 = scmp.eq.s32.totalorder %s38, 0
      %p80 = por %p78, %p79
      %p81 = scmp.ne.s32.totalorder %s69, %s70
      %p82 = scmp.eq.s32.totalorder %s39, 1
      %p83 = por %p81, %p82
      %p85 = scmp.ne.s32.totalorder %s70, %s84
      %p86 = scmp.eq.s32.totalorder %s39, 0
      %p87 = por %p85, %p86
      %s89 = sadd.s32 %s88, 1
      %p92 = scmp.eq.s32.totalorder %s33, 1
      %p93 = scmp.ne.s32.totalorder %s88, %s90
      %p94 = scmp.eq.s32.totalorder %s33, 0
      %p95 = por %p93, %p94
      %p96 = scmp.ne.s32.totalorder %s88, %s90
      %p97 = scmp.eq.s32.totalorder %s38, 1
      %p98 = por %p96, %p97
      %p99 = scmp.ne.s32.totalorder %s90, %s91
      %p100 = scmp.eq.s32.totalorder %s38, 0
      %p101 = por %p99, %p100
      %p102 = scmp.ne.s32.totalorder %s90, %s91
      %p103 = scmp.eq.s32.totalorder %s39, 1
      %p104 = por %p102, %p103
      %p106 = scmp.ne.s32.totalorder %s91, %s105
      %p107 = scmp.eq.s32.totalorder %s39, 0
      %p108 = por %p106, %p107
      %s110 = sadd.s32 %s109, 1
      %p113 = scmp.eq.s32.totalorder %s33, 1
      %p114 = scmp.ne.s32.totalorder %s109, %s111
      %p115 = scmp.eq.s32.totalorder %s33, 0
      %p116 = por %p114, %p115
      %p117 = scmp.ne.s32.totalorder %s109, %s111
      %p118 = scmp.eq.s32.totalorder %s38, 1
      %p119 = por %p117, %p118
      %p120 = scmp.ne.s32.totalorder %s111, %s112
      %p121 = scmp.eq.s32.totalorder %s38, 0
      %p122 = por %p120, %p121
      %p123 = scmp.ne.s32.totalorder %s111, %s112
      %p124 = scmp.eq.s32.totalorder %s39, 1
      %p125 = por %p123, %p124
      %p127 = scmp.ne.s32.totalorder %s112, %s126
      %p128 = scmp.eq.s32.totalorder %s39, 0
      %p129 = por %p127, %p128
      %s131 = sadd.s32 %s130, 1
      %p134 = scmp.eq.s32.totalorder %s33, 1
      %p135 = scmp.ne.s32.totalorder %s130, %s132
      %p136 = scmp.eq.s32.totalorder %s33, 0
      %p137 = por %p135, %p136
      %p138 = scmp.ne.s32.totalorder %s130, %s132
      %p139 = scmp.eq.s32.totalorder %s38, 1
      %p140 = por %p138, %p139
      %p141 = scmp.ne.s32.totalorder %s132, %s133
      %p142 = scmp.eq.s32.totalorder %s38, 0
      %p143 = por %p141, %p142
      %p144 = scmp.ne.s32.totalorder %s132, %s133
      %p145 = scmp.eq.s32.totalorder %s39, 1
      %p146 = por %p144, %p145
      %p148 = scmp.ne.s32.totalorder %s133, %s147
      %p149 = scmp.eq.s32.totalorder %s39, 0
      %p150 = por %p148, %p149
      %s152 = sadd.s32 %s151, 1
      %p155 = scmp.eq.s32.totalorder %s33, 1
      %p156 = scmp.ne.s32.totalorder %s151, %s153
      %p157 = scmp.eq.s32.totalorder %s33, 0
      %p158 = por %p156, %p157
      %p159 = scmp.ne.s32.totalorder %s151, %s153
      %p160 = scmp.eq.s32.totalorder %s38, 1
      %p161 = por %p159, %p160
      %p162 = scmp.ne.s32.totalorder %s153, %s154
      %p163 = scmp.eq.s32.totalorder %s38, 0
      %p164 = por %p162, %p163
      %p165 = scmp.ne.s32.totalorder %s153, %s154
      %p166 = scmp.eq.s32.totalorder %s39, 1
      %p167 = por %p165, %p166
      %p169 = scmp.ne.s32.totalorder %s154, %s168
      %p170 = scmp.eq.s32.totalorder %s39, 0
      %p171 = por %p169, %p170
      %s173 = sadd.s32 %s172, 1
      %p176 = scmp.eq.s32.totalorder %s33, 1
      %p177 = scmp.ne.s32.totalorder %s172, %s174
      %p178 = scmp.eq.s32.totalorder %s33, 0
      %p179 = por %p177, %p178
      %p180 = scmp.ne.s32.totalorder %s172, %s174
      %p181 = scmp.eq.s32.totalorder %s38, 1
      %p182 = por %p180, %p181
      %p183 = scmp.ne.s32.totalorder %s174, %s175
      %p184 = scmp.eq.s32.totalorder %s38, 0
      %p185 = por %p183, %p184
      %p186 = scmp.ne.s32.totalorder %s174, %s175
      %p187 = scmp.eq.s32.totalorder %s39, 1
      %p188 = por %p186, %p187
      %p190 = scmp.ne.s32.totalorder %s175, %s189
      %p191 = scmp.eq.s32.totalorder %s39, 0
      %p192 = por %p190, %p191
      %s194 = sadd.s32 %s193, 1
      %p197 = scmp.eq.s32.totalorder %s33, 1
      %p198 = scmp.ne.s32.totalorder %s193, %s195
      %p199 = scmp.eq.s32.totalorder %s33, 0
      %p200 = por %p198, %p199
      %p201 = scmp.ne.s32.totalorder %s193, %s195
      %p202 = scmp.eq.s32.totalorder %s38, 1
      %p203 = por %p201, %p202
      %p204 = scmp.ne.s32.totalorder %s195, %s196
      %p205 = scmp.eq.s32.totalorder %s38, 0
      %p206 = por %p204, %p205
      %p207 = scmp.ne.s32.totalorder %s195, %s196
      %p208 = scmp.eq.s32.totalorder %s39, 1
      %p209 = por %p207, %p208
      %p211 = scmp.ne.s32.totalorder %s196, %s210
      %p212 = scmp.eq.s32.totalorder %s39, 0
      %p213 = por %p211, %p212
      %s215 = sadd.s32 %s214, 1
      %p218 = scmp.eq.s32.totalorder %s33, 1
      %p219 = scmp.ne.s32.totalorder %s214, %s216
      %p220 = scmp.eq.s32.totalorder %s33, 0
      %p221 = por %p219, %p220
      %p222 = scmp.ne.s32.totalorder %s214, %s216
      %p223 = scmp.eq.s32.totalorder %s38, 1
      %p224 = por %p222, %p223
      %p225 = scmp.ne.s32.totalorder %s216, %s217
      %p226 = scmp.eq.s32.totalorder %s38, 0
      %p227 = por %p225, %p226
      %p228 = scmp.ne.s32.totalorder %s216, %s217
      %p229 = scmp.eq.s32.totalorder %s39, 1
      %p230 = por %p228, %p229
      %p232 = scmp.ne.s32.totalorder %s217, %s231
      %p233 = scmp.eq.s32.totalorder %s39, 0
      %p234 = por %p232, %p233
      %s236 = sadd.s32 %s235, 1
      %p239 = scmp.eq.s32.totalorder %s33, 1
      %p240 = scmp.ne.s32.totalorder %s235, %s237
      %p241 = scmp.eq.s32.totalorder %s33, 0
      %p242 = por %p240, %p241
      %p243 = scmp.ne.s32.totalorder %s235, %s237
      %p244 = scmp.eq.s32.totalorder %s38, 1
      %p245 = por %p243, %p244
      %p246 = scmp.ne.s32.totalorder %s237, %s238
      %p247 = scmp.eq.s32.totalorder %s38, 0
      %p248 = por %p246, %p247
      %p249 = scmp.ne.s32.totalorder %s237, %s238
      %p250 = scmp.eq.s32.totalorder %s39, 1
      %p251 = por %p249, %p250
      %p253 = scmp.ne.s32.totalorder %s238, %s252
      %p254 = scmp.eq.s32.totalorder %s39, 0
      %p255 = por %p253, %p254
      %s257 = sadd.s32 %s256, 1
      %p260 = scmp.eq.s32.totalorder %s33, 1
      %p261 = scmp.ne.s32.totalorder %s256, %s258
      %p262 = scmp.eq.s32.totalorder %s33, 0
      %p263 = por %p261, %p262
      %p264 = scmp.ne.s32.totalorder %s256, %s258
      %p265 = scmp.eq.s32.totalorder %s38, 1
      %p266 = por %p264, %p265
      %p267 = scmp.ne.s32.totalorder %s258, %s259
      %p268 = scmp.eq.s32.totalorder %s38, 0
      %p269 = por %p267, %p268
      %p270 = scmp.ne.s32.totalorder %s258, %s259
      %p271 = scmp.eq.s32.totalorder %s39, 1
      %p272 = por %p270, %p271
      %p274 = scmp.ne.s32.totalorder %s259, %s273
      %p275 = scmp.eq.s32.totalorder %s39, 0
      %p276 = por %p274, %p275
      %s277 = ssub.s32 %s33, %s40
      %p278 = scmp.eq.s32.totalorder %s277, 0
      %s280 = sadd.s32 %s279, 1
      %s281 = scalar_select %p278, %s279, %s280
      %p284 = pneg %p278
      %p285 = scmp.eq.s32.totalorder %s33, 1
      %p286 = por %p284, %p285
      %p287 = scmp.ne.s32.totalorder %s279, %s282
      %p288 = scmp.eq.s32.totalorder %s33, 0
      %p289 = por %p287, %p288
      %p290 = scmp.ne.s32.totalorder %s279, %s282
      %p291 = scmp.eq.s32.totalorder %s38, 1
      %p292 = por %p290, %p291
      %p293 = scmp.ne.s32.totalorder %s282, %s283
      %p294 = scmp.eq.s32.totalorder %s38, 0
      %p295 = por %p293, %p294
      %p296 = scmp.ne.s32.totalorder %s282, %s283
      %p297 = scmp.eq.s32.totalorder %s39, 1
      %p298 = por %p296, %p297
      %p300 = scmp.ne.s32.totalorder %s283, %s299
      %p301 = scmp.eq.s32.totalorder %s39, 0
      %p302 = por %p300, %p301
      %s303 = ssub.s32 %s33, %s40
      %p304 = scmp.eq.s32.totalorder %s303, 0
      %s306 = sadd.s32 %s305, 1
      %s307 = scalar_select %p304, %s305, %s306
      %p310 = pneg %p304
      %p311 = scmp.eq.s32.totalorder %s33, 1
      %p312 = por %p310, %p311
      %p313 = scmp.ne.s32.totalorder %s305, %s308
      %p314 = scmp.eq.s32.totalorder %s33, 0
      %p315 = por %p313, %p314
      %p316 = scmp.ne.s32.totalorder %s305, %s308
      %p317 = scmp.eq.s32.totalorder %s38, 1
      %p318 = por %p316, %p317
      %p319 = scmp.ne.s32.totalorder %s308, %s309
      %p320 = scmp.eq.s32.totalorder %s38, 0
      %p321 = por %p319, %p320
      %p322 = scmp.ne.s32.totalorder %s308, %s309
      %p323 = scmp.eq.s32.totalorder %s39, 1
      %p324 = por %p322, %p323
      %p326 = scmp.ne.s32.totalorder %s309, %s325
      %p327 = scmp.eq.s32.totalorder %s39, 0
      %p328 = por %p326, %p327
      %p329 = scmp.le.s32.totalorder 1, %s33
      %p330 = scmp.lt.s32.totalorder %s33, 3
      %p331 = pnand %p329, %p330
      %p332 = pneg %p331
      // Predicated region
      $region9: #{tpu_custom_call.1} parent=5 // pred_check
        _
      $region10: #{tpu_custom_call.1} parent=5 // pred_check_branch
        %334 = sbr.rel (%p331) target = $region12
      $region11: #{tpu_custom_call.1} parent=5 // pred_region
        %s335 = ssub.s32 %s33, 1
        // Predicated region
        $region13: #{tpu_custom_call.1} parent=11 // pred_check
          %p336 = pneg %p80
        $region14: #{tpu_custom_call.1} parent=11 // pred_check_branch
          %338 = sbr.rel (%p336) target = $region16
        $region15: #{tpu_custom_call.1} parent=11 // pred_region
          %s340 = ssub.s32 256, 256
          %341 = vsyncadd [#allocation6], %s340
          %s342 = sshll.u32 [#allocation5], 4
          %s343 = int_to_ptr.vmem [resolvable:$true] %s342
          %348 = dma.hbm_to_vmem [thread:$0]  %s1, 256, %s343, [#allocation6], 64, 64, 4
        $region16: #{tpu_custom_call.1} parent=11 // pred_fallthru
          _
        // Predicated region
        $region17: #{tpu_custom_call.1} parent=11 // pred_check
          %p349 = pneg %p101
        $region18: #{tpu_custom_call.1} parent=11 // pred_check_branch
          %351 = sbr.rel (%p349) target = $region20
        $region19: #{tpu_custom_call.1} parent=11 // pred_region
          %s353 = ssub.s32 16, 16
          %354 = vsyncadd [#allocation6], %s353
          %s356 = sshll.u32 [#allocation7], 4
          %s357 = int_to_ptr.vmem [resolvable:$true] %s356
          %359 = dma.hbm_to_vmem [thread:$0]  %s2, 16, %s357, [#allocation6]
        $region20: #{tpu_custom_call.1} parent=11 // pred_fallthru
          _
        // Predicated region
        $region21: #{tpu_custom_call.1} parent=11 // pred_check
          %p360 = pneg %p122
        $region22: #{tpu_custom_call.1} parent=11 // pred_check_branch
          %362 = sbr.rel (%p360) target = $region24
        $region23: #{tpu_custom_call.1} parent=11 // pred_region
          %s364 = ssub.s32 16, 16
          %365 = vsyncadd [#allocation9], %s364
          %s367 = sshll.u32 [#allocation8], 4
          %s368 = int_to_ptr.vmem [resolvable:$true] %s367
          %370 = dma.hbm_to_vmem [thread:$0]  %s3, 16, %s368, [#allocation9]
        $region24: #{tpu_custom_call.1} parent=11 // pred_fallthru
          _
        // Predicated region
        $region25: #{tpu_custom_call.1} parent=11 // pred_check
          %p371 = pneg %p143
        $region26: #{tpu_custom_call.1} parent=11 // pred_check_branch
          %373 = sbr.rel (%p371) target = $region28
        $region27: #{tpu_custom_call.1} parent=11 // pred_region
          %s375 = ssub.s32 16, 16
          %376 = vsyncadd [#allocation9], %s375
          %s378 = sshll.u32 [#allocation10], 4
          %s379 = int_to_ptr.vmem [resolvable:$true] %s378
          %381 = dma.hbm_to_vmem [thread:$0]  %s4, 16, %s379, [#allocation9]
        $region28: #{tpu_custom_call.1} parent=11 // pred_fallthru
          _
        // Predicated region
        $region29: #{tpu_custom_call.1} parent=11 // pred_check
          %p382 = pneg %p164
        $region30: #{tpu_custom_call.1} parent=11 // pred_check_branch
          %384 = sbr.rel (%p382) target = $region32
        $region31: #{tpu_custom_call.1} parent=11 // pred_region
          %s386 = ssub.s32 128, 128
          %387 = vsyncadd [#allocation12], %s386
          %s388 = sshll.u32 [#allocation11], 4
          %s389 = int_to_ptr.vmem [resolvable:$true] %s388
          %394 = dma.hbm_to_vmem [thread:$0]  %s5, 128, %s389, [#allocation12], 64, 64, 4
        $region32: #{tpu_custom_call.1} parent=11 // pred_fallthru
          _
        // Predicated region
        $region33: #{tpu_custom_call.1} parent=11 // pred_check
          %p395 = pneg %p185
        $region34: #{tpu_custom_call.1} parent=11 // pred_check_branch
          %397 = sbr.rel (%p395) target = $region36
        $region35: #{tpu_custom_call.1} parent=11 // pred_region
          %s399 = ssub.s32 128, 128
          %400 = vsyncadd [#allocation12], %s399
          %s401 = sshll.u32 [#allocation13], 4
          %s402 = int_to_ptr.vmem [resolvable:$true] %s401
          %407 = dma.hbm_to_vmem [thread:$0]  %s6, 128, %s402, [#allocation12], 64, 64, 4
        $region36: #{tpu_custom_call.1} parent=11 // pred_fallthru
          _
        // Predicated region
        $region37: #{tpu_custom_call.1} parent=11 // pred_check
          %p408 = pneg %p206
        $region38: #{tpu_custom_call.1} parent=11 // pred_check_branch
          %410 = sbr.rel (%p408) target = $region40
        $region39: #{tpu_custom_call.1} parent=11 // pred_region
          %s412 = ssub.s32 128, 128
          %413 = vsyncadd [#allocation15], %s412
          %s415 = sshll.u32 [#allocation14], 4
          %s416 = int_to_ptr.vmem [resolvable:$true] %s415
          %418 = dma.hbm_to_vmem [thread:$0]  %s7, 128, %s416, [#allocation15]
        $region40: #{tpu_custom_call.1} parent=11 // pred_fallthru
          _
        // Predicated region
        $region41: #{tpu_custom_call.1} parent=11 // pred_check
          %p419 = pneg %p227
        $region42: #{tpu_custom_call.1} parent=11 // pred_check_branch
          %421 = sbr.rel (%p419) target = $region44
        $region43: #{tpu_custom_call.1} parent=11 // pred_region
          %s423 = ssub.s32 128, 128
          %424 = vsyncadd [#allocation15], %s423
          %s426 = sshll.u32 [#allocation16], 4
          %s427 = int_to_ptr.vmem [resolvable:$true] %s426
          %429 = dma.hbm_to_vmem [thread:$0]  %s8, 128, %s427, [#allocation15]
        $region44: #{tpu_custom_call.1} parent=11 // pred_fallthru
          _
        // Predicated region
        $region45: #{tpu_custom_call.1} parent=11 // pred_check
          %p430 = pneg %p248
        $region46: #{tpu_custom_call.1} parent=11 // pred_check_branch
          %432 = sbr.rel (%p430) target = $region48
        $region47: #{tpu_custom_call.1} parent=11 // pred_region
          %s434 = ssub.s32 512, 512
          %435 = vsyncadd [#allocation18], %s434
          %s436 = sshll.u32 [#allocation17], 4
          %s437 = int_to_ptr.vmem [resolvable:$true] %s436
          %442 = dma.hbm_to_vmem [thread:$0]  %s9, 512, %s437, [#allocation18], 64, 64, 4
        $region48: #{tpu_custom_call.1} parent=11 // pred_fallthru
          _
        // Predicated region
        $region49: #{tpu_custom_call.1} parent=11 // pred_check
          %p443 = pneg %p269
        $region50: #{tpu_custom_call.1} parent=11 // pred_check_branch
          %445 = sbr.rel (%p443) target = $region52
        $region51: #{tpu_custom_call.1} parent=11 // pred_region
          %s447 = ssub.s32 16, 16
          %448 = vsyncadd [#allocation18], %s447
          %s450 = sshll.u32 [#allocation19], 4
          %s451 = int_to_ptr.vmem [resolvable:$true] %s450
          %453 = dma.hbm_to_vmem [thread:$0]  %s10, 16, %s451, [#allocation18]
        $region52: #{tpu_custom_call.1} parent=11 // pred_fallthru
          _
      $region12: #{tpu_custom_call.1} parent=5 // pred_fallthru
        _
      %p454 = scmp.lt.s32.totalorder %s33, 2
      // Predicated region
      $region53: #{tpu_custom_call.1} parent=5 // pred_check
        %p455 = pneg %p454
      $region54: #{tpu_custom_call.1} parent=5 // pred_check_branch
        %457 = sbr.rel (%p455) target = $region56
      $region55: #{tpu_custom_call.1} parent=5 // pred_region
        // Predicated region
        $region57: #{tpu_custom_call.1} parent=55 // pred_check
          %p458 = pneg %p53
        $region58: #{tpu_custom_call.1} parent=55 // pred_check_branch
          %460 = sbr.rel (%p458) target = $region60
        $region59: #{tpu_custom_call.1} parent=55 // pred_region
          %s461 = sand.u32 %s43, 1
          %s462 = scalar_lea.sflag [#allocation3], %s461
          %s463 = sand.u32 %s43, 1
          %s464 = smul.addr %s463, 8
          %s465 = scalar_lea.vmem [#allocation2], %s464
          %s467 = ssub.s32 128, 128
          %468 = vsyncadd %s462, %s467
          %s469 = smul.addr %s33, 128
          %s470 = scalar_lea.hbm %s0, %s469
          %s472 = sshll.u32 %s465, 4
          %s473 = int_to_ptr.vmem [resolvable:$true] %s472
          %475 = dma.hbm_to_vmem [thread:$0]  %s470, 128, %s473, %s462
        $region60: #{tpu_custom_call.1} parent=55 // pred_fallthru
          _
      $region56: #{tpu_custom_call.1} parent=5 // pred_fallthru
        _
      %p476 = scmp.le.s32.totalorder 1, %s33
      %p477 = scmp.lt.s32.totalorder %s33, 3
      %p478 = pnand %p476, %p477
      %p479 = pneg %p478
      // Predicated region
      $region61: #{tpu_custom_call.1} parent=5 // pred_check
        _
      $region62: #{tpu_custom_call.1} parent=5 // pred_check_branch
        %481 = sbr.rel (%p478) target = $region64
      $region63: #{tpu_custom_call.1} parent=5 // pred_region
        %s482 = ssub.s32 %s33, 1
        %s483 = sand.u32 %s46, 1
        %s484 = scalar_lea.sflag [#allocation3], %s483
        %s485 = sand.u32 %s46, 1
        %s486 = smul.addr %s485, 8
        %s487 = scalar_lea.vmem [#allocation2], %s486
        // Predicated region
        $region65: #{tpu_custom_call.1} parent=63 // pred_check
          %p488 = pneg %p59
        $region66: #{tpu_custom_call.1} parent=63 // pred_check_branch
          %490 = sbr.rel (%p488) target = $region68
        $region67: #{tpu_custom_call.1} parent=63 // pred_region
          %491 = dma.done %s484, 128
        $region68: #{tpu_custom_call.1} parent=63 // pred_fallthru
          _
        // Predicated region
        $region69: #{tpu_custom_call.1} parent=63 // pred_check
          %p492 = pneg %p80
        $region70: #{tpu_custom_call.1} parent=63 // pred_check_branch
          %494 = sbr.rel (%p492) target = $region72
        $region71: #{tpu_custom_call.1} parent=63 // pred_region
          %495 = dma.done [#allocation6], 256
        $region72: #{tpu_custom_call.1} parent=63 // pred_fallthru
          _
        // Predicated region
        $region73: #{tpu_custom_call.1} parent=63 // pred_check
          %p496 = pneg %p101
        $region74: #{tpu_custom_call.1} parent=63 // pred_check_branch
          %498 = sbr.rel (%p496) target = $region76
        $region75: #{tpu_custom_call.1} parent=63 // pred_region
          %499 = dma.done [#allocation6], 16
        $region76: #{tpu_custom_call.1} parent=63 // pred_fallthru
          _
        // Predicated region
        $region77: #{tpu_custom_call.1} parent=63 // pred_check
          %p500 = pneg %p122
        $region78: #{tpu_custom_call.1} parent=63 // pred_check_branch
          %502 = sbr.rel (%p500) target = $region80
        $region79: #{tpu_custom_call.1} parent=63 // pred_region
          %503 = dma.done [#allocation9], 16
        $region80: #{tpu_custom_call.1} parent=63 // pred_fallthru
          _
        // Predicated region
        $region81: #{tpu_custom_call.1} parent=63 // pred_check
          %p504 = pneg %p143
        $region82: #{tpu_custom_call.1} parent=63 // pred_check_branch
          %506 = sbr.rel (%p504) target = $region84
        $region83: #{tpu_custom_call.1} parent=63 // pred_region
          %507 = dma.done [#allocation9], 16
        $region84: #{tpu_custom_call.1} parent=63 // pred_fallthru
          _
        // Predicated region
        $region85: #{tpu_custom_call.1} parent=63 // pred_check
          %p508 = pneg %p164
        $region86: #{tpu_custom_call.1} parent=63 // pred_check_branch
          %510 = sbr.rel (%p508) target = $region88
        $region87: #{tpu_custom_call.1} parent=63 // pred_region
          %511 = dma.done [#allocation12], 128
        $region88: #{tpu_custom_call.1} parent=63 // pred_fallthru
          _
        // Predicated region
        $region89: #{tpu_custom_call.1} parent=63 // pred_check
          %p512 = pneg %p185
        $region90: #{tpu_custom_call.1} parent=63 // pred_check_branch
          %514 = sbr.rel (%p512) target = $region92
        $region91: #{tpu_custom_call.1} parent=63 // pred_region
          %515 = dma.done [#allocation12], 128
        $region92: #{tpu_custom_call.1} parent=63 // pred_fallthru
          _
        // Predicated region
        $region93: #{tpu_custom_call.1} parent=63 // pred_check
          %p516 = pneg %p206
        $region94: #{tpu_custom_call.1} parent=63 // pred_check_branch
          %518 = sbr.rel (%p516) target = $region96
        $region95: #{tpu_custom_call.1} parent=63 // pred_region
          %519 = dma.done [#allocation15], 128
        $region96: #{tpu_custom_call.1} parent=63 // pred_fallthru
          _
        // Predicated region
        $region97: #{tpu_custom_call.1} parent=63 // pred_check
          %p520 = pneg %p227
        $region98: #{tpu_custom_call.1} parent=63 // pred_check_branch
          %522 = sbr.rel (%p520) target = $region100
        $region99: #{tpu_custom_call.1} parent=63 // pred_region
          %523 = dma.done [#allocation15], 128
        $region100: #{tpu_custom_call.1} parent=63 // pred_fallthru
          _
        // Predicated region
        $region101: #{tpu_custom_call.1} parent=63 // pred_check
          %p524 = pneg %p248
        $region102: #{tpu_custom_call.1} parent=63 // pred_check_branch
          %526 = sbr.rel (%p524) target = $region104
        $region103: #{tpu_custom_call.1} parent=63 // pred_region
          %527 = dma.done [#allocation18], 512
        $region104: #{tpu_custom_call.1} parent=63 // pred_fallthru
          _
        // Predicated region
        $region105: #{tpu_custom_call.1} parent=63 // pred_check
          %p528 = pneg %p269
        $region106: #{tpu_custom_call.1} parent=63 // pred_check_branch
          %530 = sbr.rel (%p528) target = $region108
        $region107: #{tpu_custom_call.1} parent=63 // pred_region
          %531 = dma.done [#allocation18], 16
        $region108: #{tpu_custom_call.1} parent=63 // pred_fallthru
          _
        %s532 = sand.u32 %s46, 1
        %s533 = scalar_lea.sflag [#allocation3], %s532
        %s534 = sand.u32 %s46, 1
        %s535 = smul.addr %s534, 8
        %s536 = scalar_lea.vmem [#allocation2], %s535
        %p537 = pneg %p59
        %p538 = pneg %p56
        %p539 = pneg %p80
        %p540 = pneg %p77
        %p541 = pneg %p101
        %p542 = pneg %p98
        %p543 = pneg %p122
        %p544 = pneg %p119
        %p545 = pneg %p143
        %p546 = pneg %p140
        %p547 = pneg %p164
        %p548 = pneg %p161
        %p549 = pneg %p185
        %p550 = pneg %p182
        %p551 = pneg %p206
        %p552 = pneg %p203
        %p553 = pneg %p227
        %p554 = pneg %p224
        %p555 = pneg %p248
        %p556 = pneg %p245
        %p557 = pneg %p269
        %p558 = pneg %p266
        %p559 = pneg %p295
        %p560 = pneg %p292
        %s561 = sand.u32 %s282, 1
        %s562 = scalar_lea.sflag [#allocation4], %s561
        %s563 = sand.u32 %s282, 1
        %s564 = smul.addr %s563, 8
        %s565 = scalar_lea.vmem [#allocation20], %s564
        %p566 = pneg %p321
        %p567 = pneg %p318
        %s568 = sand.u32 %s308, 1
        %s569 = scalar_lea.sflag [#allocation22], %s568
        %s570 = sand.u32 %s308, 1
        %s571 = smul.addr %s570, 8
        %s572 = scalar_lea.vmem [#allocation21], %s571
        %v574 = vld [vmem:[%s487] sm:$0xff]
        %v575 = vpack.c.bf16 %v574, %v574
        %v576 = vld [vmem:[#allocation5] sm:$0xf]
        %v577 = vld [vmem:[#allocation5 + $0x4] sm:$0xf]
        %v578 = vld [vmem:[#allocation5 + $0x8] sm:$0xf]
        %v579 = vld [vmem:[#allocation5 + $0xc] sm:$0xf]
        %v580 = vld [vmem:[#allocation7] sm:$0x1]
        %v582 = vlaneseq
        %v583 = vshrl.u32 %v582, 7
        %v584 = vsub.s32 0, %v583
        %v585 = vrot.slane %v580, %v584
        %v591 = vunpack.c.l.b16 %v576
        %v592 = vunpack.c.l.b16 %v577
        %v593 = vunpack.c.l.b16 %v578
        %v594 = vunpack.c.l.b16 %v579
        %v595 = vpack.c.b16 %v592, %v591
        %v596 = vpack.c.b16 %v594, %v593
        %vm599 = vcmask 261120
        %v601 = vsel %vm599, %v575, 0
        %603 = vmatprep.subr.bf16.mxu0 0
        %604 = vmatpush1.bf16.msra.mxu0 %v595
        %605 = vmatprep.subr.bf16.mxu0 0
        %606 = vmatpush1.bf16.msra.mxu0 %v596
        %607 = vmatprep.subr.bf16.mxu0 0
        %608 = vmatpush1.bf16.msra.mxu0 0
        %609 = vmatprep.subr.bf16.mxu0 0
        %610 = vmatpush1.bf16.msra.mxu0 0
        %611 = vmatprep.subr.bf16.mxu0 0
        %612 = vmatpush1.bf16.msra.mxu0 0
        %613 = vmatprep.subr.bf16.mxu0 0
        %614 = vmatpush1.bf16.msra.mxu0 0
        %615 = vmatprep.subr.bf16.mxu0 0
        %616 = vmatpush1.bf16.msra.mxu0 0
        %617 = vmatprep.subr.bf16.mxu0 0
        %618 = vmatpush1.bf16.msra.mxu0 0
        %619 = vmatprep.subr.bf16.mxu0 0
        %620 = vmatpush1.bf16.msra.mxu0 0
        %621 = vmatprep.subr.bf16.mxu0 0
        %622 = vmatpush1.bf16.msra.mxu0 0
        %623 = vmatprep.subr.bf16.mxu0 0
        %624 = vmatpush1.bf16.msra.mxu0 0
        %625 = vmatprep.subr.bf16.mxu0 0
        %626 = vmatpush1.bf16.msra.mxu0 0
        %627 = vmatprep.subr.bf16.mxu0 0
        %628 = vmatpush1.bf16.msra.mxu0 0
        %629 = vmatprep.subr.bf16.mxu0 0
        %630 = vmatpush1.bf16.msra.mxu0 0
        %631 = vmatprep.subr.bf16.mxu0 0
        %632 = vmatpush1.bf16.msra.mxu0 0
        %633 = vmatprep.subr.bf16.mxu0 0
        %634 = vmatpush1.bf16.msra.mxu0 0
        %635 = vmatprep.mubr.bf16.mxu0 0
        %636 = vmatmul.mubr.bf16.gmra.mrb[0].mxu0 %v601
        %v637 = vpop.f32.mrb[0].mxu0
        %v638 = vadd.f32 %v585, %v637
        %v639 = vpop.f32.mrb[0].mxu0
        %v640 = vpop.f32.mrb[0].mxu0
        %v641 = vpop.f32.mrb[0].mxu0
        %642 = vdwg.mxu0
        %v643 = vld [vmem:[#allocation8] sm:$0x1]
        %v644 = vmul.f32 %v638, %v638
        %vm645 = vcmask 130048
        %v646 = vsel %vm645, %v644, 0.0
        %647 = vadd.xlane.f32.xlu0 %v646
        %v648 = vpop.xlane.xlu0 %647
        %v649 = vrcp.pop 16.0
        %v650 = vmul.f32 %v648, %v649
        %v651 = vadd.f32 %v650, 1e-06
        %v652 = vrsqrt.pop %v651
        %v653 = vmul.f32 %v638, %v652
        %v655 = vlaneseq
        %v656 = vshrl.u32 %v655, 7
        %v657 = vsub.s32 0, %v656
        %v658 = vrot.slane %v643, %v657
        %v660 = vmul.f32 %v653, %v658
        %v661 = vld [vmem:[#allocation10] sm:$0x1]
        %663 = vrot.lane.b32.xlu0 %v644, 112
        %v664 = vpop.permute.xlu0 %663
        %v666 = vsel %vm645, %v664, 0.0
        %667 = vadd.xlane.f32.xlu0 %v666
        %v668 = vpop.xlane.xlu0 %667
        %v669 = vmul.f32 %v668, %v649
        %v670 = vadd.f32 %v669, 1e-06
        %v671 = vrsqrt.pop %v670
        %v672 = vmul.f32 %v638, %v671
        %v674 = vlaneseq
        %v675 = vshrl.u32 %v674, 7
        %v676 = vsub.s32 0, %v675
        %v677 = vrot.slane %v661, %v676
        %678 = vrot.lane.b32.xlu0 %v677, 16
        %v679 = vpop.permute.xlu0 %678
        %v681 = vmul.f32 %v672, %v679
        %v682 = vpack.c.bf16 %v660, %v660
        %v683 = vld [vmem:[#allocation11] sm:$0xf]
        %v684 = vld [vmem:[#allocation11 + $0x4] sm:$0xf]
        %v687 = vunpack.c.l.b16 %v683
        %v688 = vunpack.c.l.b16 %v684
        %v689 = vpack.c.b16 %v688, %v687
        %v692 = vsel %vm645, %v682, 0
        %694 = vmatprep.subr.bf16.mxu0 0
        %695 = vmatpush1.bf16.msra.mxu0 %v689
        %696 = vmatprep.subr.bf16.mxu0 0
        %697 = vmatpush1.bf16.msra.mxu0 0
        %698 = vmatprep.subr.bf16.mxu0 0
        %699 = vmatpush1.bf16.msra.mxu0 0
        %700 = vmatprep.subr.bf16.mxu0 0
        %701 = vmatpush1.bf16.msra.mxu0 0
        %702 = vmatprep.subr.bf16.mxu0 0
        %703 = vmatpush1.bf16.msra.mxu0 0
        %704 = vmatprep.subr.bf16.mxu0 0
        %705 = vmatpush1.bf16.msra.mxu0 0
        %706 = vmatprep.subr.bf16.mxu0 0
        %707 = vmatpush1.bf16.msra.mxu0 0
        %708 = vmatprep.subr.bf16.mxu0 0
        %709 = vmatpush1.bf16.msra.mxu0 0
        %710 = vmatprep.subr.bf16.mxu0 0
        %711 = vmatpush1.bf16.msra.mxu0 0
        %712 = vmatprep.subr.bf16.mxu0 0
        %713 = vmatpush1.bf16.msra.mxu0 0
        %714 = vmatprep.subr.bf16.mxu0 0
        %715 = vmatpush1.bf16.msra.mxu0 0
        %716 = vmatprep.subr.bf16.mxu0 0
        %717 = vmatpush1.bf16.msra.mxu0 0
        %718 = vmatprep.subr.bf16.mxu0 0
        %719 = vmatpush1.bf16.msra.mxu0 0
        %720 = vmatprep.subr.bf16.mxu0 0
        %721 = vmatpush1.bf16.msra.mxu0 0
        %722 = vmatprep.subr.bf16.mxu0 0
        %723 = vmatpush1.bf16.msra.mxu0 0
        %724 = vmatprep.subr.bf16.mxu0 0
        %725 = vmatpush1.bf16.msra.mxu0 0
        %726 = vmatprep.mubr.bf16.mxu0 0
        %727 = vmatmul.mubr.bf16.gmra.mrb[0].mxu0 %v692
        %v728 = vpop.f32.mrb[0].mxu0
        %v729 = vadd.f32 0.0, %v728
        %v730 = vpop.f32.mrb[0].mxu0
        %v731 = vpop.f32.mrb[0].mxu0
        %v732 = vpop.f32.mrb[0].mxu0
        %733 = vdwg.mxu0
        %v734 = vpack.c.bf16 %v681, %v681
        %v735 = vld [vmem:[#allocation13] sm:$0xf]
        %v736 = vld [vmem:[#allocation13 + $0x4] sm:$0xf]
        %738 = vrot.lane.b32.xlu0 %v734, 112
        %v739 = vpop.permute.xlu0 %738
        %v742 = vunpack.c.l.b16 %v735
        %v743 = vunpack.c.l.b16 %v736
        %v744 = vpack.c.b16 %v743, %v742
        %v747 = vsel %vm645, %v739, 0
        %749 = vmatprep.subr.bf16.mxu0 0
        %750 = vmatpush1.bf16.msra.mxu0 %v744
        %751 = vmatprep.subr.bf16.mxu0 0
        %752 = vmatpush1.bf16.msra.mxu0 0
        %753 = vmatprep.subr.bf16.mxu0 0
        %754 = vmatpush1.bf16.msra.mxu0 0
        %755 = vmatprep.subr.bf16.mxu0 0
        %756 = vmatpush1.bf16.msra.mxu0 0
        %757 = vmatprep.subr.bf16.mxu0 0
        %758 = vmatpush1.bf16.msra.mxu0 0
        %759 = vmatprep.subr.bf16.mxu0 0
        %760 = vmatpush1.bf16.msra.mxu0 0
        %761 = vmatprep.subr.bf16.mxu0 0
        %762 = vmatpush1.bf16.msra.mxu0 0
        %763 = vmatprep.subr.bf16.mxu0 0
        %764 = vmatpush1.bf16.msra.mxu0 0
        %765 = vmatprep.subr.bf16.mxu0 0
        %766 = vmatpush1.bf16.msra.mxu0 0
        %767 = vmatprep.subr.bf16.mxu0 0
        %768 = vmatpush1.bf16.msra.mxu0 0
        %769 = vmatprep.subr.bf16.mxu0 0
        %770 = vmatpush1.bf16.msra.mxu0 0
        %771 = vmatprep.subr.bf16.mxu0 0
        %772 = vmatpush1.bf16.msra.mxu0 0
        %773 = vmatprep.subr.bf16.mxu0 0
        %774 = vmatpush1.bf16.msra.mxu0 0
        %775 = vmatprep.subr.bf16.mxu0 0
        %776 = vmatpush1.bf16.msra.mxu0 0
        %777 = vmatprep.subr.bf16.mxu0 0
        %778 = vmatpush1.bf16.msra.mxu0 0
        %779 = vmatprep.subr.bf16.mxu0 0
        %780 = vmatpush1.bf16.msra.mxu0 0
        %781 = vmatprep.mubr.bf16.mxu0 0
        %782 = vmatmul.mubr.bf16.gmra.mrb[0].mxu0 %v747
        %v783 = vpop.f32.mrb[0].mxu0
        %v784 = vadd.f32 0.0, %v783
        %v785 = vpop.f32.mrb[0].mxu0
        %v786 = vpop.f32.mrb[0].mxu0
        %v787 = vpop.f32.mrb[0].mxu0
        %788 = vdwg.mxu0
        %v789 = vld [vmem:[#allocation14] sm:$0xff]
        %v790 = vld [vmem:[#allocation16] sm:$0xff]
        %792 = vrot.lane.b32.xlu0 %v789, 32
        %v793 = vpop.permute.xlu0 %792
        %v795 = vmul.f32 %v638, %v793
        %v796 = vsub.f32 0.0, %v638
        %798 = vrot.lane.b32.xlu0 %v796, 92
        %v799 = vpop.permute.xlu0 %798
        %802 = vrot.lane.b32.xlu0 %v638, 100
        %v803 = vpop.permute.xlu0 %802
        %vm805 = vcmask 31744
        %v806 = vsel %vm805, %v799, %v803
        %v807 = vmul.f32 %v806, %v790
        %809 = vrot.lane.b32.xlu0 %v807, 32
        %v810 = vpop.permute.xlu0 %809
        %v812 = vadd.f32 %v795, %v810
        %814 = vrot.lane.b32.xlu0 %v812, 104
        %v815 = vpop.permute.xlu0 %814
        %vm817 = vcmask 64512
        %v818 = vsel %vm817, %v784, %v815
        %820 = vrot.lane.b32.xlu0 %v784, 104
        %v821 = vpop.permute.xlu0 %820
        %v823 = vsel %vm817, %v821, %v815
        %824 = vrot.lane.b32.xlu0 %v789, 8
        %v825 = vpop.permute.xlu0 %824
        %v827 = vmul.f32 %v729, %v825
        %v828 = vsub.f32 0.0, %v729
        %830 = vrot.lane.b32.xlu0 %v828, 116
        %v831 = vpop.permute.xlu0 %830
        %834 = vrot.lane.b32.xlu0 %v729, 124
        %v835 = vpop.permute.xlu0 %834
        %v837 = vsel %vm805, %v831, %v835
        %v838 = vmul.f32 %v837, %v790
        %840 = vrot.lane.b32.xlu0 %v838, 8
        %v841 = vpop.permute.xlu0 %840
        %v843 = vadd.f32 %v827, %v841
        %v844 = vsel %vm817, %v729, %v843
        %v845 = vpack.c.bf16 %v844, %v844
        %v846 = vpack.c.bf16 %v818, %v818
        %v848 = vsel %vm645, %v845, 0
        %v851 = vsel %vm645, %v846, 0
        %853 = vmatprep.subr.bf16.mxu0 0
        %854 = vmatpush1.bf16.xpose.msra.mxu0 %v851
        %855 = vmatprep.subr.bf16.mxu0 0
        %856 = vmatpush1.bf16.xpose.msra.mxu0 0
        %857 = vmatprep.subr.bf16.mxu0 0
        %858 = vmatpush1.bf16.xpose.msra.mxu0 0
        %859 = vmatprep.subr.bf16.mxu0 0
        %860 = vmatpush1.bf16.xpose.msra.mxu0 0
        %861 = vmatprep.subr.bf16.mxu0 0
        %862 = vmatpush1.bf16.xpose.msra.mxu0 0
        %863 = vmatprep.subr.bf16.mxu0 0
        %864 = vmatpush1.bf16.xpose.msra.mxu0 0
        %865 = vmatprep.subr.bf16.mxu0 0
        %866 = vmatpush1.bf16.xpose.msra.mxu0 0
        %867 = vmatprep.subr.bf16.mxu0 0
        %868 = vmatpush1.bf16.xpose.msra.mxu0 0
        %869 = vmatprep.subr.bf16.mxu0 0
        %870 = vmatpush1.bf16.xpose.msra.mxu0 0
        %871 = vmatprep.subr.bf16.mxu0 0
        %872 = vmatpush1.bf16.xpose.msra.mxu0 0
        %873 = vmatprep.subr.bf16.mxu0 0
        %874 = vmatpush1.bf16.xpose.msra.mxu0 0
        %875 = vmatprep.subr.bf16.mxu0 0
        %876 = vmatpush1.bf16.xpose.msra.mxu0 0
        %877 = vmatprep.subr.bf16.mxu0 0
        %878 = vmatpush1.bf16.xpose.msra.mxu0 0
        %879 = vmatprep.subr.bf16.mxu0 0
        %880 = vmatpush1.bf16.xpose.msra.mxu0 0
        %881 = vmatprep.subr.bf16.mxu0 0
        %882 = vmatpush1.bf16.xpose.msra.mxu0 0
        %883 = vmatprep.subr.bf16.mxu0 0
        %884 = vmatpush1.bf16.xpose.msra.mxu0 0
        %885 = vmatprep.mubr.bf16.mxu0 0
        %886 = vmatmul.mubr.bf16.gmra.mrb[0].mxu0 %v848
        %v887 = vpop.f32.mrb[0].mxu0
        %v888 = vadd.f32 0.0, %v887
        %v889 = vpop.f32.mrb[0].mxu0
        %v890 = vpop.f32.mrb[0].mxu0
        %v891 = vpop.f32.mrb[0].mxu0
        %892 = vdwg.mxu0
        %v893 = vmul.f32 %v888, 0.25
        %v894 = vsel %vm817, %v893, -inf
        %895 = vmax.xlane.f32.xlu0 %v894
        %v896 = vpop.xlane.xlu0 %895
        %v897 = vsub.f32 %v893, %v896
        %v898 = vmul.f32 %v897, 1.442695
        %v899 = vpow.pop %v898
        %v900 = vsel %vm817, %v899, 0.0
        %901 = vadd.xlane.f32.xlu0 %v900
        %v902 = vpop.xlane.xlu0 %901
        %v903 = vrcp.pop %v902
        %v904 = vmul.f32 %v899, %v903
        %v905 = vpack.c.bf16 %v904, %v904
        %v906 = vpack.c.bf16 %v784, %v784
        %908 = vrot.lane.b32.xlu0 %v906, 120
        %v909 = vpop.permute.xlu0 %908
        %v911 = vsel %vm817, %v905, 0
        %vm913 = vcmask 1043456
        %v915 = vsel %vm913, %v909, 0
        %917 = vmatprep.subr.bf16.mxu0 0
        %918 = vmatpush1.bf16.msra.mxu0 %v915
        %919 = vmatprep.subr.bf16.mxu0 0
        %920 = vmatpush1.bf16.msra.mxu0 0
        %921 = vmatprep.subr.bf16.mxu0 0
        %922 = vmatpush1.bf16.msra.mxu0 0
        %923 = vmatprep.subr.bf16.mxu0 0
        %924 = vmatpush1.bf16.msra.mxu0 0
        %925 = vmatprep.subr.bf16.mxu0 0
        %926 = vmatpush1.bf16.msra.mxu0 0
        %927 = vmatprep.subr.bf16.mxu0 0
        %928 = vmatpush1.bf16.msra.mxu0 0
        %929 = vmatprep.subr.bf16.mxu0 0
        %930 = vmatpush1.bf16.msra.mxu0 0
        %931 = vmatprep.subr.bf16.mxu0 0
        %932 = vmatpush1.bf16.msra.mxu0 0
        %933 = vmatprep.subr.bf16.mxu0 0
        %934 = vmatpush1.bf16.msra.mxu0 0
        %935 = vmatprep.subr.bf16.mxu0 0
        %936 = vmatpush1.bf16.msra.mxu0 0
        %937 = vmatprep.subr.bf16.mxu0 0
        %938 = vmatpush1.bf16.msra.mxu0 0
        %939 = vmatprep.subr.bf16.mxu0 0
        %940 = vmatpush1.bf16.msra.mxu0 0
        %941 = vmatprep.subr.bf16.mxu0 0
        %942 = vmatpush1.bf16.msra.mxu0 0
        %943 = vmatprep.subr.bf16.mxu0 0
        %944 = vmatpush1.bf16.msra.mxu0 0
        %945 = vmatprep.subr.bf16.mxu0 0
        %946 = vmatpush1.bf16.msra.mxu0 0
        %947 = vmatprep.subr.bf16.mxu0 0
        %948 = vmatpush1.bf16.msra.mxu0 0
        %949 = vmatprep.mubr.bf16.mxu0 0
        %950 = vmatmul.mubr.bf16.gmra.mrb[0].mxu0 %v911
        %v951 = vpop.f32.mrb[0].mxu0
        %v952 = vadd.f32 0.0, %v951
        %v953 = vpop.f32.mrb[0].mxu0
        %v954 = vpop.f32.mrb[0].mxu0
        %v955 = vpop.f32.mrb[0].mxu0
        %956 = vdwg.mxu0
        %957 = vrot.lane.b32.xlu0 %v789, 24
        %v958 = vpop.permute.xlu0 %957
        %v960 = vmul.f32 %v729, %v958
        %961 = vrot.lane.b32.xlu0 %v828, 100
        %v962 = vpop.permute.xlu0 %961
        %964 = vrot.lane.b32.xlu0 %v729, 108
        %v965 = vpop.permute.xlu0 %964
        %v967 = vsel %vm805, %v962, %v965
        %v968 = vmul.f32 %v967, %v790
        %970 = vrot.lane.b32.xlu0 %v968, 24
        %v971 = vpop.permute.xlu0 %970
        %v973 = vadd.f32 %v960, %v971
        %974 = vrot.lane.b32.xlu0 %v729, 112
        %v975 = vpop.permute.xlu0 %974
        %978 = vrot.lane.b32.xlu0 %v973, 112
        %v979 = vpop.permute.xlu0 %978
        %v981 = vsel %vm817, %v975, %v979
        %v982 = vpack.c.bf16 %v981, %v981
        %v984 = vsel %vm645, %v982, 0
        %986 = vmatprep.subr.bf16.mxu0 0
        %987 = vmatpush1.bf16.xpose.msra.mxu0 %v851
        %988 = vmatprep.subr.bf16.mxu0 0
        %989 = vmatpush1.bf16.xpose.msra.mxu0 0
        %990 = vmatprep.subr.bf16.mxu0 0
        %991 = vmatpush1.bf16.xpose.msra.mxu0 0
        %992 = vmatprep.subr.bf16.mxu0 0
        %993 = vmatpush1.bf16.xpose.msra.mxu0 0
        %994 = vmatprep.subr.bf16.mxu0 0
        %995 = vmatpush1.bf16.xpose.msra.mxu0 0
        %996 = vmatprep.subr.bf16.mxu0 0
        %997 = vmatpush1.bf16.xpose.msra.mxu0 0
        %998 = vmatprep.subr.bf16.mxu0 0
        %999 = vmatpush1.bf16.xpose.msra.mxu0 0
        %1000 = vmatprep.subr.bf16.mxu0 0
        %1001 = vmatpush1.bf16.xpose.msra.mxu0 0
        %1002 = vmatprep.subr.bf16.mxu0 0
        %1003 = vmatpush1.bf16.xpose.msra.mxu0 0
        %1004 = vmatprep.subr.bf16.mxu0 0
        %1005 = vmatpush1.bf16.xpose.msra.mxu0 0
        %1006 = vmatprep.subr.bf16.mxu0 0
        %1007 = vmatpush1.bf16.xpose.msra.mxu0 0
        %1008 = vmatprep.subr.bf16.mxu0 0
        %1009 = vmatpush1.bf16.xpose.msra.mxu0 0
        %1010 = vmatprep.subr.bf16.mxu0 0
        %1011 = vmatpush1.bf16.xpose.msra.mxu0 0
        %1012 = vmatprep.subr.bf16.mxu0 0
        %1013 = vmatpush1.bf16.xpose.msra.mxu0 0
        %1014 = vmatprep.subr.bf16.mxu0 0
        %1015 = vmatpush1.bf16.xpose.msra.mxu0 0
        %1016 = vmatprep.subr.bf16.mxu0 0
        %1017 = vmatpush1.bf16.xpose.msra.mxu0 0
        %1018 = vmatprep.mubr.bf16.mxu0 0
        %1019 = vmatmul.mubr.bf16.gmra.mrb[0].mxu0 %v984
        %v1020 = vpop.f32.mrb[0].mxu0
        %v1021 = vadd.f32 0.0, %v1020
        %v1022 = vpop.f32.mrb[0].mxu0
        %v1023 = vpop.f32.mrb[0].mxu0
        %v1024 = vpop.f32.mrb[0].mxu0
        %1025 = vdwg.mxu0
        %v1026 = vmul.f32 %v1021, 0.25
        %v1027 = vsel %vm817, %v1026, -inf
        %1028 = vmax.xlane.f32.xlu0 %v1027
        %v1029 = vpop.xlane.xlu0 %1028
        %v1030 = vsub.f32 %v1026, %v1029
        %v1031 = vmul.f32 %v1030, 1.442695
        %v1032 = vpow.pop %v1031
        %v1033 = vsel %vm817, %v1032, 0.0
        %1034 = vadd.xlane.f32.xlu0 %v1033
        %v1035 = vpop.xlane.xlu0 %1034
        %v1036 = vrcp.pop %v1035
        %v1037 = vmul.f32 %v1032, %v1036
        %v1038 = vpack.c.bf16 %v1037, %v1037
        %v1040 = vsel %vm817, %v1038, 0
        %1042 = vmatprep.subr.bf16.mxu0 0
        %1043 = vmatpush1.bf16.msra.mxu0 %v915
        %1044 = vmatprep.subr.bf16.mxu0 0
        %1045 = vmatpush1.bf16.msra.mxu0 0
        %1046 = vmatprep.subr.bf16.mxu0 0
        %1047 = vmatpush1.bf16.msra.mxu0 0
        %1048 = vmatprep.subr.bf16.mxu0 0
        %1049 = vmatpush1.bf16.msra.mxu0 0
        %1050 = vmatprep.subr.bf16.mxu0 0
        %1051 = vmatpush1.bf16.msra.mxu0 0
        %1052 = vmatprep.subr.bf16.mxu0 0
        %1053 = vmatpush1.bf16.msra.mxu0 0
        %1054 = vmatprep.subr.bf16.mxu0 0
        %1055 = vmatpush1.bf16.msra.mxu0 0
        %1056 = vmatprep.subr.bf16.mxu0 0
        %1057 = vmatpush1.bf16.msra.mxu0 0
        %1058 = vmatprep.subr.bf16.mxu0 0
        %1059 = vmatpush1.bf16.msra.mxu0 0
        %1060 = vmatprep.subr.bf16.mxu0 0
        %1061 = vmatpush1.bf16.msra.mxu0 0
        %1062 = vmatprep.subr.bf16.mxu0 0
        %1063 = vmatpush1.bf16.msra.mxu0 0
        %1064 = vmatprep.subr.bf16.mxu0 0
        %1065 = vmatpush1.bf16.msra.mxu0 0
        %1066 = vmatprep.subr.bf16.mxu0 0
        %1067 = vmatpush1.bf16.msra.mxu0 0
        %1068 = vmatprep.subr.bf16.mxu0 0
        %1069 = vmatpush1.bf16.msra.mxu0 0
        %1070 = vmatprep.subr.bf16.mxu0 0
        %1071 = vmatpush1.bf16.msra.mxu0 0
        %1072 = vmatprep.subr.bf16.mxu0 0
        %1073 = vmatpush1.bf16.msra.mxu0 0
        %1074 = vmatprep.mubr.bf16.mxu0 0
        %1075 = vmatmul.mubr.bf16.gmra.mrb[0].mxu0 %v1040
        %v1076 = vpop.f32.mrb[0].mxu0
        %v1077 = vadd.f32 0.0, %v1076
        %v1078 = vpop.f32.mrb[0].mxu0
        %v1079 = vpop.f32.mrb[0].mxu0
        %v1080 = vpop.f32.mrb[0].mxu0
        %1081 = vdwg.mxu0
        %1082 = vrot.lane.b32.xlu0 %v789, 40
        %v1083 = vpop.permute.xlu0 %1082
        %v1085 = vmul.f32 %v729, %v1083
        %1086 = vrot.lane.b32.xlu0 %v828, 84
        %v1087 = vpop.permute.xlu0 %1086
        %1089 = vrot.lane.b32.xlu0 %v729, 92
        %v1090 = vpop.permute.xlu0 %1089
        %v1092 = vsel %vm805, %v1087, %v1090
        %v1093 = vmul.f32 %v1092, %v790
        %1095 = vrot.lane.b32.xlu0 %v1093, 40
        %v1096 = vpop.permute.xlu0 %1095
        %v1098 = vadd.f32 %v1085, %v1096
        %1099 = vrot.lane.b32.xlu0 %v729, 96
        %v1100 = vpop.permute.xlu0 %1099
        %1103 = vrot.lane.b32.xlu0 %v1098, 96
        %v1104 = vpop.permute.xlu0 %1103
        %v1106 = vsel %vm817, %v1100, %v1104
        %v1107 = vpack.c.bf16 %v1106, %v1106
        %v1108 = vpack.c.bf16 %v823, %v823
        %v1110 = vsel %vm645, %v1107, 0
        %v1113 = vsel %vm645, %v1108, 0
        %1115 = vmatprep.subr.bf16.mxu0 0
        %1116 = vmatpush1.bf16.xpose.msra.mxu0 %v1113
        %1117 = vmatprep.subr.bf16.mxu0 0
        %1118 = vmatpush1.bf16.xpose.msra.mxu0 0
        %1119 = vmatprep.subr.bf16.mxu0 0
        %1120 = vmatpush1.bf16.xpose.msra.mxu0 0
        %1121 = vmatprep.subr.bf16.mxu0 0
        %1122 = vmatpush1.bf16.xpose.msra.mxu0 0
        %1123 = vmatprep.subr.bf16.mxu0 0
        %1124 = vmatpush1.bf16.xpose.msra.mxu0 0
        %1125 = vmatprep.subr.bf16.mxu0 0
        %1126 = vmatpush1.bf16.xpose.msra.mxu0 0
        %1127 = vmatprep.subr.bf16.mxu0 0
        %1128 = vmatpush1.bf16.xpose.msra.mxu0 0
        %1129 = vmatprep.subr.bf16.mxu0 0
        %1130 = vmatpush1.bf16.xpose.msra.mxu0 0
        %1131 = vmatprep.subr.bf16.mxu0 0
        %1132 = vmatpush1.bf16.xpose.msra.mxu0 0
        %1133 = vmatprep.subr.bf16.mxu0 0
        %1134 = vmatpush1.bf16.xpose.msra.mxu0 0
        %1135 = vmatprep.subr.bf16.mxu0 0
        %1136 = vmatpush1.bf16.xpose.msra.mxu0 0
        %1137 = vmatprep.subr.bf16.mxu0 0
        %1138 = vmatpush1.bf16.xpose.msra.mxu0 0
        %1139 = vmatprep.subr.bf16.mxu0 0
        %1140 = vmatpush1.bf16.xpose.msra.mxu0 0
        %1141 = vmatprep.subr.bf16.mxu0 0
        %1142 = vmatpush1.bf16.xpose.msra.mxu0 0
        %1143 = vmatprep.subr.bf16.mxu0 0
        %1144 = vmatpush1.bf16.xpose.msra.mxu0 0
        %1145 = vmatprep.subr.bf16.mxu0 0
        %1146 = vmatpush1.bf16.xpose.msra.mxu0 0
        %1147 = vmatprep.mubr.bf16.mxu0 0
        %1148 = vmatmul.mubr.bf16.gmra.mrb[0].mxu0 %v1110
        %v1149 = vpop.f32.mrb[0].mxu0
        %v1150 = vadd.f32 0.0, %v1149
        %v1151 = vpop.f32.mrb[0].mxu0
        %v1152 = vpop.f32.mrb[0].mxu0
        %v1153 = vpop.f32.mrb[0].mxu0
        %1154 = vdwg.mxu0
        %v1155 = vmul.f32 %v1150, 0.25
        %v1156 = vsel %vm817, %v1155, -inf
        %1157 = vmax.xlane.f32.xlu0 %v1156
        %v1158 = vpop.xlane.xlu0 %1157
        %v1159 = vsub.f32 %v1155, %v1158
        %v1160 = vmul.f32 %v1159, 1.442695
        %v1161 = vpow.pop %v1160
        %v1162 = vsel %vm817, %v1161, 0.0
        %1163 = vadd.xlane.f32.xlu0 %v1162
        %v1164 = vpop.xlane.xlu0 %1163
        %v1165 = vrcp.pop %v1164
        %v1166 = vmul.f32 %v1161, %v1165
        %v1167 = vpack.c.bf16 %v1166, %v1166
        %1168 = vrot.lane.b32.xlu0 %v906, 96
        %v1169 = vpop.permute.xlu0 %1168
        %v1171 = vsel %vm817, %v1167, 0
        %v1174 = vsel %vm913, %v1169, 0
        %1176 = vmatprep.subr.bf16.mxu0 0
        %1177 = vmatpush1.bf16.msra.mxu0 %v1174
        %1178 = vmatprep.subr.bf16.mxu0 0
        %1179 = vmatpush1.bf16.msra.mxu0 0
        %1180 = vmatprep.subr.bf16.mxu0 0
        %1181 = vmatpush1.bf16.msra.mxu0 0
        %1182 = vmatprep.subr.bf16.mxu0 0
        %1183 = vmatpush1.bf16.msra.mxu0 0
        %1184 = vmatprep.subr.bf16.mxu0 0
        %1185 = vmatpush1.bf16.msra.mxu0 0
        %1186 = vmatprep.subr.bf16.mxu0 0
        %1187 = vmatpush1.bf16.msra.mxu0 0
        %1188 = vmatprep.subr.bf16.mxu0 0
        %1189 = vmatpush1.bf16.msra.mxu0 0
        %1190 = vmatprep.subr.bf16.mxu0 0
        %1191 = vmatpush1.bf16.msra.mxu0 0
        %1192 = vmatprep.subr.bf16.mxu0 0
        %1193 = vmatpush1.bf16.msra.mxu0 0
        %1194 = vmatprep.subr.bf16.mxu0 0
        %1195 = vmatpush1.bf16.msra.mxu0 0
        %1196 = vmatprep.subr.bf16.mxu0 0
        %1197 = vmatpush1.bf16.msra.mxu0 0
        %1198 = vmatprep.subr.bf16.mxu0 0
        %1199 = vmatpush1.bf16.msra.mxu0 0
        %1200 = vmatprep.subr.bf16.mxu0 0
        %1201 = vmatpush1.bf16.msra.mxu0 0
        %1202 = vmatprep.subr.bf16.mxu0 0
        %1203 = vmatpush1.bf16.msra.mxu0 0
        %1204 = vmatprep.subr.bf16.mxu0 0
        %1205 = vmatpush1.bf16.msra.mxu0 0
        %1206 = vmatprep.subr.bf16.mxu0 0
        %1207 = vmatpush1.bf16.msra.mxu0 0
        %1208 = vmatprep.mubr.bf16.mxu0 0
        %1209 = vmatmul.mubr.bf16.gmra.mrb[0].mxu0 %v1171
        %v1210 = vpop.f32.mrb[0].mxu0
        %v1211 = vadd.f32 0.0, %v1210
        %v1212 = vpop.f32.mrb[0].mxu0
        %v1213 = vpop.f32.mrb[0].mxu0
        %v1214 = vpop.f32.mrb[0].mxu0
        %1215 = vdwg.mxu0
        %1216 = vrot.lane.b32.xlu0 %v789, 56
        %v1217 = vpop.permute.xlu0 %1216
        %v1219 = vmul.f32 %v729, %v1217
        %1220 = vrot.lane.b32.xlu0 %v828, 68
        %v1221 = vpop.permute.xlu0 %1220
        %1223 = vrot.lane.b32.xlu0 %v729, 76
        %v1224 = vpop.permute.xlu0 %1223
        %v1226 = vsel %vm805, %v1221, %v1224
        %v1227 = vmul.f32 %v1226, %v790
        %1229 = vrot.lane.b32.xlu0 %v1227, 56
        %v1230 = vpop.permute.xlu0 %1229
        %v1232 = vadd.f32 %v1219, %v1230
        %1233 = vrot.lane.b32.xlu0 %v729, 80
        %v1234 = vpop.permute.xlu0 %1233
        %1237 = vrot.lane.b32.xlu0 %v1232, 80
        %v1238 = vpop.permute.xlu0 %1237
        %v1240 = vsel %vm817, %v1234, %v1238
        %v1241 = vpack.c.bf16 %v1240, %v1240
        %v1243 = vsel %vm645, %v1241, 0
        %1245 = vmatprep.subr.bf16.mxu0 0
        %1246 = vmatpush1.bf16.xpose.msra.mxu0 %v1113
        %1247 = vmatprep.subr.bf16.mxu0 0
        %1248 = vmatpush1.bf16.xpose.msra.mxu0 0
        %1249 = vmatprep.subr.bf16.mxu0 0
        %1250 = vmatpush1.bf16.xpose.msra.mxu0 0
        %1251 = vmatprep.subr.bf16.mxu0 0
        %1252 = vmatpush1.bf16.xpose.msra.mxu0 0
        %1253 = vmatprep.subr.bf16.mxu0 0
        %1254 = vmatpush1.bf16.xpose.msra.mxu0 0
        %1255 = vmatprep.subr.bf16.mxu0 0
        %1256 = vmatpush1.bf16.xpose.msra.mxu0 0
        %1257 = vmatprep.subr.bf16.mxu0 0
        %1258 = vmatpush1.bf16.xpose.msra.mxu0 0
        %1259 = vmatprep.subr.bf16.mxu0 0
        %1260 = vmatpush1.bf16.xpose.msra.mxu0 0
        %1261 = vmatprep.subr.bf16.mxu0 0
        %1262 = vmatpush1.bf16.xpose.msra.mxu0 0
        %1263 = vmatprep.subr.bf16.mxu0 0
        %1264 = vmatpush1.bf16.xpose.msra.mxu0 0
        %1265 = vmatprep.subr.bf16.mxu0 0
        %1266 = vmatpush1.bf16.xpose.msra.mxu0 0
        %1267 = vmatprep.subr.bf16.mxu0 0
        %1268 = vmatpush1.bf16.xpose.msra.mxu0 0
        %1269 = vmatprep.subr.bf16.mxu0 0
        %1270 = vmatpush1.bf16.xpose.msra.mxu0 0
        %1271 = vmatprep.subr.bf16.mxu0 0
        %1272 = vmatpush1.bf16.xpose.msra.mxu0 0
        %1273 = vmatprep.subr.bf16.mxu0 0
        %1274 = vmatpush1.bf16.xpose.msra.mxu0 0
        %1275 = vmatprep.subr.bf16.mxu0 0
        %1276 = vmatpush1.bf16.xpose.msra.mxu0 0
        %1277 = vmatprep.mubr.bf16.mxu0 0
        %1278 = vmatmul.mubr.bf16.gmra.mrb[0].mxu0 %v1243
        %v1279 = vpop.f32.mrb[0].mxu0
        %v1280 = vadd.f32 0.0, %v1279
        %v1281 = vpop.f32.mrb[0].mxu0
        %v1282 = vpop.f32.mrb[0].mxu0
        %v1283 = vpop.f32.mrb[0].mxu0
        %1284 = vdwg.mxu0
        %v1285 = vmul.f32 %v1280, 0.25
        %v1286 = vsel %vm817, %v1285, -inf
        %1287 = vmax.xlane.f32.xlu0 %v1286
        %v1288 = vpop.xlane.xlu0 %1287
        %v1289 = vsub.f32 %v1285, %v1288
        %v1290 = vmul.f32 %v1289, 1.442695
        %v1291 = vpow.pop %v1290
        %v1292 = vsel %vm817, %v1291, 0.0
        %1293 = vadd.xlane.f32.xlu0 %v1292
        %v1294 = vpop.xlane.xlu0 %1293
        %v1295 = vrcp.pop %v1294
        %v1296 = vmul.f32 %v1291, %v1295
        %v1297 = vpack.c.bf16 %v1296, %v1296
        %v1299 = vsel %vm817, %v1297, 0
        %1301 = vmatprep.subr.bf16.mxu0 0
        %1302 = vmatpush1.bf16.msra.mxu0 %v1174
        %1303 = vmatprep.subr.bf16.mxu0 0
        %1304 = vmatpush1.bf16.msra.mxu0 0
        %1305 = vmatprep.subr.bf16.mxu0 0
        %1306 = vmatpush1.bf16.msra.mxu0 0
        %1307 = vmatprep.subr.bf16.mxu0 0
        %1308 = vmatpush1.bf16.msra.mxu0 0
        %1309 = vmatprep.subr.bf16.mxu0 0
        %1310 = vmatpush1.bf16.msra.mxu0 0
        %1311 = vmatprep.subr.bf16.mxu0 0
        %1312 = vmatpush1.bf16.msra.mxu0 0
        %1313 = vmatprep.subr.bf16.mxu0 0
        %1314 = vmatpush1.bf16.msra.mxu0 0
        %1315 = vmatprep.subr.bf16.mxu0 0
        %1316 = vmatpush1.bf16.msra.mxu0 0
        %1317 = vmatprep.subr.bf16.mxu0 0
        %1318 = vmatpush1.bf16.msra.mxu0 0
        %1319 = vmatprep.subr.bf16.mxu0 0
        %1320 = vmatpush1.bf16.msra.mxu0 0
        %1321 = vmatprep.subr.bf16.mxu0 0
        %1322 = vmatpush1.bf16.msra.mxu0 0
        %1323 = vmatprep.subr.bf16.mxu0 0
        %1324 = vmatpush1.bf16.msra.mxu0 0
        %1325 = vmatprep.subr.bf16.mxu0 0
        %1326 = vmatpush1.bf16.msra.mxu0 0
        %1327 = vmatprep.subr.bf16.mxu0 0
        %1328 = vmatpush1.bf16.msra.mxu0 0
        %1329 = vmatprep.subr.bf16.mxu0 0
        %1330 = vmatpush1.bf16.msra.mxu0 0
        %1331 = vmatprep.subr.bf16.mxu0 0
        %1332 = vmatpush1.bf16.msra.mxu0 0
        %1333 = vmatprep.mubr.bf16.mxu0 0
        %1334 = vmatmul.mubr.bf16.gmra.mrb[0].mxu0 %v1299
        %v1335 = vpop.f32.mrb[0].mxu0
        %v1336 = vadd.f32 0.0, %v1335
        %v1337 = vpop.f32.mrb[0].mxu0
        %v1338 = vpop.f32.mrb[0].mxu0
        %v1339 = vpop.f32.mrb[0].mxu0
        %1340 = vdwg.mxu0
        %1342 = vrot.lane.b32.xlu0 %v1077, 16
        %v1343 = vpop.permute.xlu0 %1342
        %1346 = vrot.lane.b32.xlu0 %v1211, 32
        %v1347 = vpop.permute.xlu0 %1346
        %1350 = vrot.lane.b32.xlu0 %v1336, 48
        %v1351 = vpop.permute.xlu0 %1350
        %v1353 = vsel %vm645, %v952, %v1343
        %v1354 = vsel %vm599, %v1353, %v1347
        %vm1355 = vcmask 392192
        %v1356 = vsel %vm1355, %v1354, %v1351
        %v1357 = vpack.c.bf16 %v1356, %v1356
        %v1358 = vld [vmem:[#allocation17] sm:$0xf]
        %v1359 = vld [vmem:[#allocation17 + $0x4] sm:$0xf]
        %v1360 = vld [vmem:[#allocation17 + $0x8] sm:$0xf]
        %v1361 = vld [vmem:[#allocation17 + $0xc] sm:$0xf]
        %v1362 = vld [vmem:[#allocation17 + $0x10] sm:$0xf]
        %v1363 = vld [vmem:[#allocation17 + $0x14] sm:$0xf]
        %v1364 = vld [vmem:[#allocation17 + $0x18] sm:$0xf]
        %v1365 = vld [vmem:[#allocation17 + $0x1c] sm:$0xf]
        %v1366 = vld [vmem:[#allocation19] sm:$0x1]
        %v1368 = vlaneseq
        %v1369 = vshrl.u32 %v1368, 7
        %v1370 = vsub.s32 0, %v1369
        %v1371 = vrot.slane %v1366, %v1370
        %v1381 = vunpack.c.l.b16 %v1358
        %v1382 = vunpack.c.l.b16 %v1359
        %v1383 = vunpack.c.l.b16 %v1360
        %v1384 = vunpack.c.l.b16 %v1361
        %v1385 = vunpack.c.l.b16 %v1362
        %v1386 = vunpack.c.l.b16 %v1363
        %v1387 = vunpack.c.l.b16 %v1364
        %v1388 = vunpack.c.l.b16 %v1365
        %v1389 = vpack.c.b16 %v1382, %v1381
        %v1390 = vpack.c.b16 %v1384, %v1383
        %v1391 = vpack.c.b16 %v1386, %v1385
        %v1392 = vpack.c.b16 %v1388, %v1387
        %vm1397 = vcmask 523264
        %v1399 = vsel %vm1397, %v1357, 0
        %1401 = vmatprep.subr.bf16.mxu0 0
        %1402 = vmatpush1.bf16.msra.mxu0 %v1389
        %1403 = vmatprep.subr.bf16.mxu0 0
        %1404 = vmatpush1.bf16.msra.mxu0 %v1390
        %1405 = vmatprep.subr.bf16.mxu0 0
        %1406 = vmatpush1.bf16.msra.mxu0 %v1391
        %1407 = vmatprep.subr.bf16.mxu0 0
        %1408 = vmatpush1.bf16.msra.mxu0 %v1392
        %1409 = vmatprep.subr.bf16.mxu0 0
        %1410 = vmatpush1.bf16.msra.mxu0 0
        %1411 = vmatprep.subr.bf16.mxu0 0
        %1412 = vmatpush1.bf16.msra.mxu0 0
        %1413 = vmatprep.subr.bf16.mxu0 0
        %1414 = vmatpush1.bf16.msra.mxu0 0
        %1415 = vmatprep.subr.bf16.mxu0 0
        %1416 = vmatpush1.bf16.msra.mxu0 0
        %1417 = vmatprep.subr.bf16.mxu0 0
        %1418 = vmatpush1.bf16.msra.mxu0 0
        %1419 = vmatprep.subr.bf16.mxu0 0
        %1420 = vmatpush1.bf16.msra.mxu0 0
        %1421 = vmatprep.subr.bf16.mxu0 0
        %1422 = vmatpush1.bf16.msra.mxu0 0
        %1423 = vmatprep.subr.bf16.mxu0 0
        %1424 = vmatpush1.bf16.msra.mxu0 0
        %1425 = vmatprep.subr.bf16.mxu0 0
        %1426 = vmatpush1.bf16.msra.mxu0 0
        %1427 = vmatprep.subr.bf16.mxu0 0
        %1428 = vmatpush1.bf16.msra.mxu0 0
        %1429 = vmatprep.subr.bf16.mxu0 0
        %1430 = vmatpush1.bf16.msra.mxu0 0
        %1431 = vmatprep.subr.bf16.mxu0 0
        %1432 = vmatpush1.bf16.msra.mxu0 0
        %1433 = vmatprep.mubr.bf16.mxu0 0
        %1434 = vmatmul.mubr.bf16.gmra.mrb[0].mxu0 %v1399
        %v1435 = vpop.f32.mrb[0].mxu0
        %v1436 = vadd.f32 %v1371, %v1435
        %v1437 = vpop.f32.mrb[0].mxu0
        %v1438 = vpop.f32.mrb[0].mxu0
        %v1439 = vpop.f32.mrb[0].mxu0
        %1440 = vdwg.mxu0
        %1441 = vst.msk [vmem:[%s565] sm:$0xff] %vm599, %v1436
        %1443 = vrot.lane.b32.xlu0 %v1037, 8
        %v1444 = vpop.permute.xlu0 %1443
        %1447 = vrot.lane.b32.xlu0 %v1166, 16
        %v1448 = vpop.permute.xlu0 %1447
        %1451 = vrot.lane.b32.xlu0 %v1296, 24
        %v1452 = vpop.permute.xlu0 %1451
        %v1454 = vsel %vm817, %v904, %v1444
        %v1455 = vsel %vm645, %v1454, %v1448
        %vm1456 = vcmask 195584
        %v1457 = vsel %vm1456, %v1455, %v1452
        %1458 = vst.msk [vmem:[%s572] sm:$0xff] %vm599, %v1457
        %s1459 = sand.u32 %s282, 1
        %s1460 = scalar_lea.sflag [#allocation4], %s1459
        %s1461 = sand.u32 %s282, 1
        %s1462 = smul.addr %s1461, 8
        %s1463 = scalar_lea.vmem [#allocation20], %s1462
        %s1464 = sand.u32 %s308, 1
        %s1465 = scalar_lea.sflag [#allocation22], %s1464
        %s1466 = sand.u32 %s308, 1
        %s1467 = smul.addr %s1466, 8
        %s1468 = scalar_lea.vmem [#allocation21], %s1467
        // Predicated region
        $region109: #{tpu_custom_call.1} parent=63 // pred_check
          %p1469 = pneg %p292
        $region110: #{tpu_custom_call.1} parent=63 // pred_check_branch
          %1471 = sbr.rel (%p1469) target = $region112
        $region111: #{tpu_custom_call.1} parent=63 // pred_region
          %s1473 = ssub.s32 128, 128
          %1474 = vsyncadd %s1460, %s1473
          %s1475 = smul.addr %s38, 128
          %s1476 = scalar_lea.hbm %s11, %s1475
          %s1478 = sshll.u32 %s1463, 4
          %s1479 = int_to_ptr.vmem [resolvable:$true] %s1478
          %1481 = dma.vmem_to_hbm [thread:$0]  %s1479, 128, %s1476, %s1460
        $region112: #{tpu_custom_call.1} parent=63 // pred_fallthru
          _
        // Predicated region
        $region113: #{tpu_custom_call.1} parent=63 // pred_check
          %p1482 = pneg %p318
        $region114: #{tpu_custom_call.1} parent=63 // pred_check_branch
          %1484 = sbr.rel (%p1482) target = $region116
        $region115: #{tpu_custom_call.1} parent=63 // pred_region
          %s1486 = ssub.s32 128, 128
          %1487 = vsyncadd %s1465, %s1486
          %s1488 = smul.addr %s38, 128
          %s1489 = scalar_lea.hbm %s12, %s1488
          %s1491 = sshll.u32 %s1468, 4
          %s1492 = int_to_ptr.vmem [resolvable:$true] %s1491
          %1494 = dma.vmem_to_hbm [thread:$0]  %s1492, 128, %s1489, %s1465
        $region116: #{tpu_custom_call.1} parent=63 // pred_fallthru
          _
      $region64: #{tpu_custom_call.1} parent=5 // pred_fallthru
        _
      %p1495 = scmp.le.s32.totalorder 2, %s33
      // Predicated region
      $region117: #{tpu_custom_call.1} parent=5 // pred_check
        %p1496 = pneg %p1495
      $region118: #{tpu_custom_call.1} parent=5 // pred_check_branch
        %1498 = sbr.rel (%p1496) target = $region120
      $region119: #{tpu_custom_call.1} parent=5 // pred_region
        %s1499 = ssub.s32 %s33, 2
        // Predicated region
        $region121: #{tpu_custom_call.1} parent=119 // pred_check
          %p1500 = pneg %p298
        $region122: #{tpu_custom_call.1} parent=119 // pred_check_branch
          %1502 = sbr.rel (%p1500) target = $region124
        $region123: #{tpu_custom_call.1} parent=119 // pred_region
          %s1503 = sand.u32 %s283, 1
          %s1504 = scalar_lea.sflag [#allocation4], %s1503
          %s1505 = sand.u32 %s283, 1
          %s1506 = smul.addr %s1505, 8
          %s1507 = scalar_lea.vmem [#allocation20], %s1506
          %1508 = dma.done %s1504, 128
        $region124: #{tpu_custom_call.1} parent=119 // pred_fallthru
          _
        // Predicated region
        $region125: #{tpu_custom_call.1} parent=119 // pred_check
          %p1509 = pneg %p324
        $region126: #{tpu_custom_call.1} parent=119 // pred_check_branch
          %1511 = sbr.rel (%p1509) target = $region128
        $region127: #{tpu_custom_call.1} parent=119 // pred_region
          %s1512 = sand.u32 %s309, 1
          %s1513 = scalar_lea.sflag [#allocation22], %s1512
          %s1514 = sand.u32 %s309, 1
          %s1515 = smul.addr %s1514, 8
          %s1516 = scalar_lea.vmem [#allocation21], %s1515
          %1517 = dma.done %s1513, 128
        $region128: #{tpu_custom_call.1} parent=119 // pred_fallthru
          _
      $region120: #{tpu_custom_call.1} parent=5 // pred_fallthru
        _
    $region6: #{tpu_custom_call.1} parent=1 // loop_footer
      %s37 = sadd.s32 1, %s33
    $region7: #{tpu_custom_call.1} parent=1 // loop_footer_branch
      %32 = sbr.rel target = $region3
    $region8: #{tpu_custom_call.1} parent=1 // loop_exit
      _
    %1518 = vsyncpa [#allocation3], 1
    %s1519 = scalar_lea.sflag [#allocation3], 1
    %1520 = vsyncpa %s1519, 1
    %1521 = vsyncpa [#allocation6], 1
    %1522 = vsyncpa [#allocation9], 1
    %1523 = vsyncpa [#allocation12], 1
    %1524 = vsyncpa [#allocation15], 1
    %1525 = vsyncpa [#allocation18], 1
    %1526 = vsyncpa [#allocation4], 1
    %s1527 = scalar_lea.sflag [#allocation4], 1
    %1528 = vsyncpa %s1527, 1
    %1529 = vsyncpa [#allocation22], 1
    %s1530 = scalar_lea.sflag [#allocation22], 1
    %1531 = vsyncpa %s1530, 1

</llo_original>
